<compile_context>
chip_gen: v7x
topology: tpu7x:2x2x1
jax: 0.10.0
libtpu: 0.0.40
codegen_flags: <defaults>
</compile_context>

<pallas_src>
import functools
import math

import jax
import jax.numpy as jnp
from jax import lax
from jax.experimental import pallas as pl
from jax.experimental.pallas import tpu as pltpu

VMEM_LIMIT = 64 * 1024 * 1024   # budget against v7x's 64 MiB per-core VMEM


def _round_up(x, m):
    return ((x + m - 1) // m) * m


def _k_tiling(k):
    """K padded to 128; single K block up to 2048, else 512-wide K tiles."""
    kp = _round_up(k, 128)
    if kp <= 2048:
        return kp, kp
    return _round_up(k, 512), 512


# ----------------------------------------------------------------------------
# Pallas kernel 1: fused (affine -> relu) . matmul . (+bias -> activation)
# ----------------------------------------------------------------------------
def _mm_kernel(a_ref, s_ref, t_ref, b_ref, bias_ref, o_ref, *, pre_relu, post_act):
    k = pl.program_id(1)
    a = a_ref[...] * s_ref[...] + t_ref[...]      # folded BatchNorm (per K col)
    if pre_relu:
        a = jnp.maximum(a, 0.0)
    contrib = jnp.dot(a.astype(jnp.bfloat16), b_ref[...],
                      preferred_element_type=jnp.float32)

    @pl.when(k == 0)
    def _():
        o_ref[...] = contrib

    @pl.when(k > 0)
    def _():
        o_ref[...] += contrib

    @pl.when(k == pl.num_programs(1) - 1)
    def _():
        r = o_ref[...] + bias_ref[...]
        if post_act == "leaky":
            r = jnp.where(r >= 0.0, r, 0.2 * r)
        o_ref[...] = r


@functools.partial(jax.jit, static_argnames=("tm", "tk", "pre_relu", "post_act"))
def _matmul_padded(a_p, s_p, t_p, b_p, bias_p, *, tm, tk, pre_relu, post_act):
    Mp, Kp = a_p.shape
    Np = b_p.shape[1]
    grid = (Mp // tm, Kp // tk)
    return pl.pallas_call(
        functools.partial(_mm_kernel, pre_relu=pre_relu, post_act=post_act),
        out_shape=jax.ShapeDtypeStruct((Mp, Np), jnp.float32),
        grid_spec=pltpu.PrefetchScalarGridSpec(
            num_scalar_prefetch=0,
            grid=grid,
            in_specs=[
                pl.BlockSpec((tm, tk), lambda m, k: (m, k)),
                pl.BlockSpec((1, tk), lambda m, k: (0, k)),
                pl.BlockSpec((1, tk), lambda m, k: (0, k)),
                pl.BlockSpec((tk, Np), lambda m, k: (k, 0)),
                pl.BlockSpec((1, Np), lambda m, k: (0, 0)),
            ],
            out_specs=pl.BlockSpec((tm, Np), lambda m, k: (m, 0)),
        ),
        compiler_params=pltpu.CompilerParams(
            dimension_semantics=("parallel", "arbitrary"),
            vmem_limit_bytes=VMEM_LIMIT),
    )(a_p, s_p, t_p, b_p, bias_p)


def matmul_fused(a, p, scale=None, shift=None, *, pre_relu=False, post_act="none"):
    """out = post_act( relu?(a*scale+shift) @ W + bias ); W/bias prebuilt in p."""
    M, K = a.shape
    Kp, TK, Np = p["Kp"], p["TK"], p["Np"]
    Mp8 = _round_up(M, 8)
    if Mp8 <= 256:
        tm, Mp = Mp8, Mp8
    else:
        tm, Mp = 256, _round_up(M, 256)
    a_p = jnp.pad(a, ((0, Mp - M), (0, Kp - K)))
    if scale is None:
        s_p = jnp.ones((1, Kp), jnp.float32)
        t_p = jnp.zeros((1, Kp), jnp.float32)
    else:
        # zero-padded scale/shift + zero-padded weight rows keep padded K inert
        s_p = jnp.pad(scale, (0, Kp - K)).reshape(1, Kp)
        t_p = jnp.pad(shift, (0, Kp - K)).reshape(1, Kp)
    out = _matmul_padded(a_p, s_p, t_p, p["wp"], p["bp"],
                         tm=tm, tk=TK, pre_relu=pre_relu, post_act=post_act)
    return out[:M, :p["N"]]


# ----------------------------------------------------------------------------
# Pallas kernel 2: direct 3x3 (stride-1) convolution, no HBM im2col
# ----------------------------------------------------------------------------
def _conv_kernel(x_ref, w_ref, b_ref, o_ref, *, kh, kw, ho, wo, post_act):
    cin = x_ref.shape[3]
    tn = o_ref.shape[3]
    xb = x_ref[0].astype(jnp.bfloat16)            # (Hp, Wp, Cin), on-chip cast
    acc = jnp.zeros((ho * wo, tn), jnp.float32)
    for dy in range(kh):                          # static tap loop
        for dx in range(kw):
            win = xb[dy:dy + ho, dx:dx + wo, :].reshape(ho * wo, cin)
            acc = acc + jnp.dot(win, w_ref[dy * kw + dx],
                                preferred_element_type=jnp.float32)
    r = acc + b_ref[...]
    if post_act == "leaky":
        r = jnp.where(r >= 0.0, r, 0.2 * r)
    o_ref[0] = r.reshape(ho, wo, tn)


@functools.partial(jax.jit, static_argnames=("post_act",))
def _conv3x3_padded(xp, wp, bp, *, post_act):
    """xp: spatially pre-padded NHWC.  wp: (kh*kw, Cin, Np) bf16.  bp: (1, Np)."""
    N, Hp, Wp, C = xp.shape
    kk, _, Np = wp.shape
    kh = kw = int(round(math.sqrt(kk)))
    Ho, Wo = Hp - kh + 1, Wp - kw + 1
    tn = 128                                       # Np is a multiple of 128
    grid = (N, Np // tn)
    # TODO(synk): at large resolutions the full spatial block should be row-tiled
    #             (halo via manual DMA); fine at these feature-map sizes.
    return pl.pallas_call(
        functools.partial(_conv_kernel, kh=kh, kw=kw, ho=Ho, wo=Wo,
                          post_act=post_act),
        out_shape=jax.ShapeDtypeStruct((N, Ho, Wo, Np), jnp.float32),
        grid_spec=pltpu.PrefetchScalarGridSpec(
            num_scalar_prefetch=0,
            grid=grid,
            in_specs=[
                pl.BlockSpec((1, Hp, Wp, C), lambda n, co: (n, 0, 0, 0)),
                pl.BlockSpec((kk, C, tn), lambda n, co: (0, 0, co)),
                pl.BlockSpec((1, tn), lambda n, co: (0, co)),
            ],
            out_specs=pl.BlockSpec((1, Ho, Wo, tn), lambda n, co: (n, 0, 0, co)),
        ),
        compiler_params=pltpu.CompilerParams(
            dimension_semantics=("parallel", "parallel"),
            vmem_limit_bytes=VMEM_LIMIT),
    )(xp, wp, bp)


def conv3x3_direct(x, p, *, post_act="none"):
    """3x3, stride 1, padding 1 conv on NHWC x using the direct-conv kernel."""
    xp = jnp.pad(x, ((0, 0), (1, 1), (1, 1), (0, 0)))
    out = _conv3x3_padded(xp, p["wp"], p["bp"], post_act=post_act)
    return out[..., :p["N"]]


# ----------------------------------------------------------------------------
# Pallas kernels 3/4: row-tiled BatchNorm statistics + affine(+ReLU) apply
# ----------------------------------------------------------------------------
def _stats_kernel(x_ref, sum_ref, ssq_ref):
    r = pl.program_id(0)
    x = x_ref[...]
    s = jnp.sum(x, axis=0, keepdims=True)
    q = jnp.sum(x * x, axis=0, keepdims=True)

    @pl.when(r == 0)
    def _():
        sum_ref[...] = s
        ssq_ref[...] = q

    @pl.when(r > 0)
    def _():
        sum_ref[...] += s
        ssq_ref[...] += q


@jax.jit
def _stats(x2p):
    Mp, C = x2p.shape
    tr = Mp if Mp <= 512 else 512
    return pl.pallas_call(
        _stats_kernel,
        out_shape=(jax.ShapeDtypeStruct((1, C), jnp.float32),
                   jax.ShapeDtypeStruct((1, C), jnp.float32)),
        grid_spec=pltpu.PrefetchScalarGridSpec(
            num_scalar_prefetch=0,
            grid=(Mp // tr,),
            in_specs=[pl.BlockSpec((tr, C), lambda r: (r, 0))],
            out_specs=(pl.BlockSpec((1, C), lambda r: (0, 0)),
                       pl.BlockSpec((1, C), lambda r: (0, 0)))),
        compiler_params=pltpu.CompilerParams(
            dimension_semantics=("arbitrary",),
            vmem_limit_bytes=VMEM_LIMIT),
    )(x2p)


def _affine_kernel(x_ref, s_ref, t_ref, o_ref, *, relu):
    y = x_ref[...] * s_ref[...] + t_ref[...]
    if relu:
        y = jnp.maximum(y, 0.0)
    o_ref[...] = y


@functools.partial(jax.jit, static_argnames=("relu",))
def _affine(x2p, scale, shift, *, relu):
    Mp, C = x2p.shape
    tr = Mp if Mp <= 512 else 512
    return pl.pallas_call(
        functools.partial(_affine_kernel, relu=relu),
        out_shape=jax.ShapeDtypeStruct((Mp, C), jnp.float32),
        grid_spec=pltpu.PrefetchScalarGridSpec(
            num_scalar_prefetch=0,
            grid=(Mp // tr,),
            in_specs=[
                pl.BlockSpec((tr, C), lambda r: (r, 0)),
                pl.BlockSpec((1, C), lambda r: (0, 0)),
                pl.BlockSpec((1, C), lambda r: (0, 0)),
            ],
            out_specs=pl.BlockSpec((tr, C), lambda r: (r, 0))),
        compiler_params=pltpu.CompilerParams(
            dimension_semantics=("parallel",),
            vmem_limit_bytes=VMEM_LIMIT),
    )(x2p, scale, shift)


def batchnorm2d(x_nhwc, gamma, beta, *, relu, eps=1e-5):
    """Training-mode BatchNorm2d (batch statistics) + optional ReLU."""
    N, H, W, C = x_nhwc.shape
    M = N * H * W
    Mp8 = _round_up(M, 8)
    tr = Mp8 if Mp8 <= 512 else 512
    Mp = _round_up(M, tr)
    x2 = jnp.pad(x_nhwc.reshape(M, C), ((0, Mp - M), (0, 0)))  # zero rows: inert
    s, q = _stats(x2)
    mean = s[0] / M
    var = jnp.maximum(q[0] / M - mean * mean, 0.0)             # biased variance
    scale = gamma * lax.rsqrt(var + eps)
    shift = beta - mean * scale
    y = _affine(x2, scale.reshape(1, C), shift.reshape(1, C), relu=relu)
    return y[:M].reshape(N, H, W, C)


def bn_fold(x_nhwc, gamma, beta, eps=1e-5):
    """Training-mode BN folded to a per-channel affine (applied inside the 1x1
    conv matmul kernel).  Stats stay in plain JAX to cap the number of distinct
    Pallas compilations (82 dense layers, each with a distinct channel count).
    TODO(synk): fold the stats pass into a Pallas kernel / the producing conv."""
    mu = jnp.mean(x_nhwc, axis=(0, 1, 2))
    var = jnp.mean(jnp.square(x_nhwc - mu), axis=(0, 1, 2))
    scale = gamma / jnp.sqrt(var + eps)
    shift = beta - mu * scale
    return scale, shift


# ----------------------------------------------------------------------------
# Conv wrappers (matmul path for 1x1 / conv0; direct kernel for 3x3)
# ----------------------------------------------------------------------------
def conv1x1(x, p, *, pre_scale=None, pre_shift=None, pre_relu=False,
            post_act="none"):
    N, H, W, C = x.shape
    a = x.reshape(N * H * W, C)
    out = matmul_fused(a, p, pre_scale, pre_shift,
                       pre_relu=pre_relu, post_act=post_act)
    return out.reshape(N, H, W, p["N"])


def conv_im2col(x, p, *, stride, padding, post_act="none"):
    """Generic conv via im2col + fused matmul (used only for the single 7x7
    stride-2 conv0 layer; 3x3 convs use the direct kernel instead)."""
    N, H, W, Cin = x.shape
    kh, kw = p["kh"], p["kw"]
    Ho = (H + 2 * padding - kh) // stride + 1
    Wo = (W + 2 * padding - kw) // stride + 1
    if padding:
        x = jnp.pad(x, ((0, 0), (padding, padding), (padding, padding), (0, 0)))
    cols = []
    for dy in range(kh):
        for dx in range(kw):
            cols.append(x[:, dy:dy + stride * Ho:stride,
                          dx:dx + stride * Wo:stride, :])
    a = jnp.concatenate(cols, axis=-1).reshape(N * Ho * Wo, kh * kw * Cin)
    out = matmul_fused(a, p, post_act=post_act)
    return out.reshape(N, Ho, Wo, p["N"])


# ----------------------------------------------------------------------------
# Pooling / bilinear upsample (plain JAX glue)
# TODO(synk): max/avg pooling and bilinear interpolation kept in plain JAX;
#             the dominant conv/matmul/BN compute is in the Pallas kernels.
# ----------------------------------------------------------------------------
def maxpool_3x3_s2_p1(x):
    return lax.reduce_window(x, -jnp.inf, lax.max, (1, 3, 3, 1), (1, 2, 2, 1),
                             padding=((0, 0), (1, 1), (1, 1), (0, 0)))


def avgpool_2x2(x):
    s = lax.reduce_window(x, 0.0, lax.add, (1, 2, 2, 1), (1, 2, 2, 1),
                          padding="VALID")
    return s * 0.25


def upsample_bilinear_align_corners(x, Ht, Wt):
    N, Hs, Ws, C = x.shape

    def grid1d(out_sz, in_sz):
        if out_sz == 1 or in_sz == 1:
            idx = jnp.zeros((out_sz,), jnp.float32)
        else:
            idx = jnp.arange(out_sz, dtype=jnp.float32) * (in_sz - 1) / (out_sz - 1)
        lo = jnp.floor(idx).astype(jnp.int32)
        hi = jnp.minimum(lo + 1, in_sz - 1)
        w = idx - lo.astype(jnp.float32)
        return lo, hi, w

    y0, y1, wy = grid1d(Ht, Hs)
    x0, x1, wx = grid1d(Wt, Ws)
    wx_ = wx[None, None, :, None]
    wy_ = wy[None, :, None, None]
    top = x[:, y0][:, :, x0] * (1 - wx_) + x[:, y0][:, :, x1] * wx_
    bot = x[:, y1][:, :, x0] * (1 - wx_) + x[:, y1][:, :, x1] * wx_
    return top * (1 - wy_) + bot * wy_


# ----------------------------------------------------------------------------
# Deterministic synthetic parameters, pre-transposed / pre-padded / pre-cast
# ----------------------------------------------------------------------------
class ParamGen:
    def __init__(self, seed=0):
        self.key = jax.random.PRNGKey(seed)

    def normal(self, shape, std):
        self.key, k = jax.random.split(self.key)
        return jax.random.normal(k, shape, jnp.float32) * std


def prep_conv_mm(pg, cout, cin, kh, kw, bias=False):
    """Conv weight prepped for the matmul kernel: (Kp, Np) bf16 + (1, Np) bias."""
    std = 1.0 / math.sqrt(cin * kh * kw)
    w = pg.normal((cout, cin, kh, kw), std)
    b = pg.normal((cout,), 0.01) if bias else jnp.zeros((cout,), jnp.float32)
    K = kh * kw * cin
    Kp, TK = _k_tiling(K)
    Np = _round_up(cout, 128)
    wt = jnp.transpose(w, (2, 3, 1, 0)).reshape(K, cout)
    wp = jnp.pad(wt, ((0, Kp - K), (0, Np - cout))).astype(jnp.bfloat16)
    bp = jnp.pad(b, (0, Np - cout)).reshape(1, Np)
    return {"wp": wp, "bp": bp, "K": K, "Kp": Kp, "TK": TK,
            "N": cout, "Np": Np, "cin": cin, "kh": kh, "kw": kw}


def prep_conv_dw(pg, cout, cin, kh, kw, bias=False):
    """Conv weight prepped for the direct-conv kernel: (kh*kw, Cin, Np) bf16."""
    std = 1.0 / math.sqrt(cin * kh * kw)
    w = pg.normal((cout, cin, kh, kw), std)
    b = pg.normal((cout,), 0.01) if bias else jnp.zeros((cout,), jnp.float32)
    Np = _round_up(cout, 128)
    wt = jnp.transpose(w, (2, 3, 1, 0)).reshape(kh * kw, cin, cout)
    wp = jnp.pad(wt, ((0, 0), (0, 0), (0, Np - cout))).astype(jnp.bfloat16)
    bp = jnp.pad(b, (0, Np - cout)).reshape(1, Np)
    return {"wp": wp, "bp": bp, "N": cout, "Np": Np,
            "cin": cin, "kh": kh, "kw": kw}


def make_bn(c):
    return {"gamma": jnp.ones((c,), jnp.float32),
            "beta": jnp.zeros((c,), jnp.float32)}


GROWTH, BN_SIZE, NUM_INIT = 32, 4, 64
BLOCK_CONFIG = (6, 12, 32, 32)          # DenseNet-169


def build_encoder_params(pg):
    p = {"conv0": prep_conv_mm(pg, NUM_INIT, 3, 7, 7),
         "norm0": make_bn(NUM_INIT)}
    nf = NUM_INIT
    blocks = []
    for bi, nlayers in enumerate(BLOCK_CONFIG):
        layers = []
        for li in range(nlayers):
            cin = nf + li * GROWTH
            layers.append({
                "norm1": make_bn(cin),
                "conv1": prep_conv_mm(pg, BN_SIZE * GROWTH, cin, 1, 1),
                "norm2": make_bn(BN_SIZE * GROWTH),
                "conv2": prep_conv_dw(pg, GROWTH, BN_SIZE * GROWTH, 3, 3),
            })
        nf = nf + nlayers * GROWTH
        block = {"layers": layers}
        if bi != len(BLOCK_CONFIG) - 1:
            block["transition"] = {"norm": make_bn(nf),
                                   "conv": prep_conv_mm(pg, nf // 2, nf, 1, 1)}
            nf = nf // 2
        blocks.append(block)
    p["blocks"] = blocks
    p["norm5"] = make_bn(nf)            # nf == 1664
    return p


def build_decoder_params(pg, num_features=1664):
    f = num_features

    def up(skip_in, out):
        return {"convA": prep_conv_dw(pg, out, skip_in, 3, 3, bias=True),
                "convB": prep_conv_dw(pg, out, out, 3, 3, bias=True)}

    return {
        "conv2": prep_conv_mm(pg, f, f, 1, 1, bias=True),
        "up1": up(f // 1 + 256, f // 2),
        "up2": up(f // 2 + 128, f // 4),
        "up3": up(f // 4 + 64, f // 8),
        "up4": up(f // 8 + 64, f // 16),
        "conv3": prep_conv_dw(pg, 1, f // 16, 3, 3, bias=True),
    }


# ----------------------------------------------------------------------------
# Encoder / Decoder / Generator forward
# ----------------------------------------------------------------------------
def encoder_forward(p, x):
    feats = [x]                                                   # features[0]
    x = conv_im2col(x, p["conv0"], stride=2, padding=3)           # [1] conv0
    feats.append(x)
    x = batchnorm2d(x, p["norm0"]["gamma"], p["norm0"]["beta"], relu=False)
    feats.append(x)                                               # [2] norm0
    x = jnp.maximum(x, 0.0)
    feats.append(x)                                               # [3] relu0
    x = maxpool_3x3_s2_p1(x)
    feats.append(x)                                               # [4] pool0
    for block in p["blocks"]:
        for layer in block["layers"]:
            # norm1 + relu1 folded into the 1x1 bottleneck conv kernel
            s, t = bn_fold(x, layer["norm1"]["gamma"], layer["norm1"]["beta"])
            btl = conv1x1(x, layer["conv1"],
                          pre_scale=s, pre_shift=t, pre_relu=True)
            # norm2 + relu2 materialized (3x3 conv zero-pads after activation)
            act = batchnorm2d(btl, layer["norm2"]["gamma"],
                              layer["norm2"]["beta"], relu=True)
            new = conv3x3_direct(act, layer["conv2"])
            # TODO(synk): replace the growing concat with a preallocated
            #             channel buffer + dynamic_update_slice to cut O(L^2)
            #             HBM copy traffic in the dense blocks.
            x = jnp.concatenate([x, new], axis=-1)
        feats.append(x)                                           # denseblock k
        if "transition" in block:
            tr = block["transition"]
            s, t = bn_fold(x, tr["norm"]["gamma"], tr["norm"]["beta"])
            x = conv1x1(x, tr["conv"], pre_scale=s, pre_shift=t, pre_relu=True)
            x = avgpool_2x2(x)
            feats.append(x)                                       # transition k
    x = batchnorm2d(x, p["norm5"]["gamma"], p["norm5"]["beta"], relu=False)
    feats.append(x)                                               # [12] norm5
    return feats


def upsample_block(params, x, concat_with):
    up_x = upsample_bilinear_align_corners(
        x, concat_with.shape[1], concat_with.shape[2])
    cat = jnp.concatenate([up_x, concat_with], axis=-1)
    a = conv3x3_direct(cat, params["convA"])
    # Note: reference forward applies only leakyreluB (leakyreluA is unused).
    return conv3x3_direct(a, params["convB"], post_act="leaky")


def decoder_forward(p, feats):
    xb0, xb1, xb2, xb3, xb4 = feats[3], feats[4], feats[6], feats[8], feats[12]
    # conv2(relu(x_block4)) : relu folded into the 1x1 conv's pre-activation
    x_d0 = conv1x1(xb4, p["conv2"], pre_relu=True)
    x_d1 = upsample_block(p["up1"], x_d0, xb3)
    x_d2 = upsample_block(p["up2"], x_d1, xb2)
    x_d3 = upsample_block(p["up3"], x_d2, xb1)
    x_d4 = upsample_block(p["up4"], x_d3, xb0)
    return conv3x3_direct(x_d4, p["conv3"])


def generator_forward(enc_p, dec_p, input1_nchw):
    # layout: I/O is NCHW (as PyTorch); compute is NHWC internally.
    x = jnp.transpose(input1_nchw, (0, 2, 3, 1)).astype(jnp.float32)
    x = jnp.tile(x, (1, 1, 1, 3))           # input1.repeat(1, 3, 1, 1)
    feats = encoder_forward(enc_p, x)
    dec = decoder_forward(dec_p, feats)
    enc_last = jnp.transpose(feats[-1], (0, 3, 1, 2))   # back to NCHW
    dec_out = jnp.transpose(dec, (0, 3, 1, 2))
    return enc_last, dec_out


# ----------------------------------------------------------------------------
if __name__ == "__main__":
    pg = ParamGen(0)
    enc_params = build_encoder_params(pg)
    dec_params = build_decoder_params(pg, num_features=1664)

    key = jax.random.PRNGKey(0)
    input1 = jax.random.normal(key, (1, 1, 64, 64), jnp.float32)

    enc_last, dec_out = generator_forward(enc_params, dec_params, input1)
    jax.block_until_ready((enc_last, dec_out))

    assert enc_last.shape == (1, 1664, 2, 2), enc_last.shape
    assert dec_out.shape == (1, 1, 32, 32), dec_out.shape
    assert bool(jnp.all(jnp.isfinite(enc_last)))
    assert bool(jnp.all(jnp.isfinite(dec_out)))
    print("KERNEL_OK")
</pallas_src>

<mosaic_0001>
module attributes {stable_mosaic.version = 11 : i64} {
  func.func @_mm_kernel(%arg0: i32, %arg1: i32, %arg2: memref<256x256xf32, #tpu.memory_space<vmem>>, %arg3: memref<1x256xf32, #tpu.memory_space<vmem>>, %arg4: memref<1x256xf32, #tpu.memory_space<vmem>>, %arg5: memref<256x128xbf16, #tpu.memory_space<vmem>>, %arg6: memref<1x128xf32, #tpu.memory_space<vmem>>, %arg7: memref<256x128xf32, #tpu.memory_space<vmem>>) attributes {dimension_semantics = [#tpu.dimension_semantics<parallel>, #tpu.dimension_semantics<arbitrary>], iteration_bounds = array<i64: 4, 1>, scalar_prefetch = 0 : i64, scratch_operands = 0 : i64, tpu.core_type = #tpu.core_type<tc>, window_params = [{transform_indices = @transform_0, window_bounds = array<i64: 256, 256>}, {transform_indices = @transform_1, window_bounds = array<i64: 1, 256>}, {transform_indices = @transform_2, window_bounds = array<i64: 1, 256>}, {transform_indices = @transform_3, window_bounds = array<i64: 256, 128>}, {pipeline_mode = #tpu.pipeline_mode<synchronous>, transform_indices = @transform_4, window_bounds = array<i64: 1, 128>}, {transform_indices = @transform_5, window_bounds = array<i64: 256, 128>}]} {
    %c0 = arith.constant 0 : index
    %c0_0 = arith.constant 0 : index
    %0 = vector.load %arg2[%c0, %c0_0] : memref<256x256xf32, #tpu.memory_space<vmem>>, vector<256x256xf32>
    %c0_1 = arith.constant 0 : index
    %c0_2 = arith.constant 0 : index
    %1 = vector.load %arg3[%c0_1, %c0_2] : memref<1x256xf32, #tpu.memory_space<vmem>>, vector<1x256xf32>
    %2 = vector.broadcast %1 : vector<1x256xf32> to vector<256x256xf32>
    %3 = arith.mulf %0, %2 : vector<256x256xf32>
    %c0_3 = arith.constant 0 : index
    %c0_4 = arith.constant 0 : index
    %4 = vector.load %arg4[%c0_3, %c0_4] : memref<1x256xf32, #tpu.memory_space<vmem>>, vector<1x256xf32>
    %5 = vector.broadcast %4 : vector<1x256xf32> to vector<256x256xf32>
    %6 = arith.addf %3, %5 : vector<256x256xf32>
    %7 = arith.truncf %6 : vector<256x256xf32> to vector<256x256xbf16>
    %c0_5 = arith.constant 0 : index
    %c0_6 = arith.constant 0 : index
    %8 = vector.load %arg5[%c0_5, %c0_6] : memref<256x128xbf16, #tpu.memory_space<vmem>>, vector<256x128xbf16>
    %cst = arith.constant dense<0.000000e+00> : vector<256x128xf32>
    %9 = tpu.matmul %7, %8, %cst {dimension_numbers = #tpu.dot_dimension_numbers<[1], [0], [0], [1], [0, 0, 1, 1], [], []>} : vector<256x256xbf16>, vector<256x128xbf16>, vector<256x128xf32> -> vector<256x128xf32>
    %c0_i32 = arith.constant 0 : i32
    %10 = arith.cmpi eq, %arg1, %c0_i32 : i32
    %11 = arith.extui %10 : i1 to i32
    %c0_i32_7 = arith.constant 0 : i32
    %12 = arith.cmpi ne, %11, %c0_i32_7 : i32
    scf.if %12 {
      %c0_12 = arith.constant 0 : index
      %c0_13 = arith.constant 0 : index
      %19 = vector.load %arg7[%c0_12, %c0_13] : memref<256x128xf32, #tpu.memory_space<vmem>>, vector<256x128xf32>
      tpu.vector_store %arg7[%c0_12, %c0_13], %9 {strides = array<i32>} : memref<256x128xf32, #tpu.memory_space<vmem>>, vector<256x128xf32>,
    } else {
    }
    %c0_i32_8 = arith.constant 0 : i32
    %13 = arith.cmpi sgt, %arg1, %c0_i32_8 : i32
    %14 = arith.extui %13 : i1 to i32
    %c0_i32_9 = arith.constant 0 : i32
    %15 = arith.cmpi ne, %14, %c0_i32_9 : i32
    scf.if %15 {
      %c0_12 = arith.constant 0 : index
      %c0_13 = arith.constant 0 : index
      %19 = vector.load %arg7[%c0_12, %c0_13] : memref<256x128xf32, #tpu.memory_space<vmem>>, vector<256x128xf32>
      %20 = arith.addf %19, %9 : vector<256x128xf32>
      %c0_14 = arith.constant 0 : index
      %c0_15 = arith.constant 0 : index
      %21 = vector.load %arg7[%c0_14, %c0_15] : memref<256x128xf32, #tpu.memory_space<vmem>>, vector<256x128xf32>
      tpu.vector_store %arg7[%c0_14, %c0_15], %20 {strides = array<i32>} : memref<256x128xf32, #tpu.memory_space<vmem>>, vector<256x128xf32>,
    } else {
    }
    %c0_i32_10 = arith.constant 0 : i32
    %16 = arith.cmpi eq, %arg1, %c0_i32_10 : i32
    %17 = arith.extui %16 : i1 to i32
    %c0_i32_11 = arith.constant 0 : i32
    %18 = arith.cmpi ne, %17, %c0_i32_11 : i32
    scf.if %18 {
      %c0_12 = arith.constant 0 : index
      %c0_13 = arith.constant 0 : index
      %19 = vector.load %arg7[%c0_12, %c0_13] : memref<256x128xf32, #tpu.memory_space<vmem>>, vector<256x128xf32>
      %c0_14 = arith.constant 0 : index
      %c0_15 = arith.constant 0 : index
      %20 = vector.load %arg6[%c0_14, %c0_15] : memref<1x128xf32, #tpu.memory_space<vmem>>, vector<1x128xf32>
      %21 = vector.broadcast %20 : vector<1x128xf32> to vector<256x128xf32>
      %22 = arith.addf %19, %21 : vector<256x128xf32>
      %c0_16 = arith.constant 0 : index
      %c0_17 = arith.constant 0 : index
      %23 = vector.load %arg7[%c0_16, %c0_17] : memref<256x128xf32, #tpu.memory_space<vmem>>, vector<256x128xf32>
      tpu.vector_store %arg7[%c0_16, %c0_17], %22 {strides = array<i32>} : memref<256x128xf32, #tpu.memory_space<vmem>>, vector<256x128xf32>,
    } else {
    }
    return
  }
  func.func @transform_0(%arg0: i32, %arg1: i32) -> (i32, i32) {
    %c0_i32 = arith.constant 0 : i32
    return %arg0, %arg1 : i32, i32
  }
  func.func @transform_1(%arg0: i32, %arg1: i32) -> (i32, i32) {
    %c0_i32 = arith.constant 0 : i32
    %c0_i32_0 = arith.constant 0 : i32
    return %c0_i32, %arg1 : i32, i32
  }
  func.func @transform_2(%arg0: i32, %arg1: i32) -> (i32, i32) {
    %c0_i32 = arith.constant 0 : i32
    %c0_i32_0 = arith.constant 0 : i32
    return %c0_i32, %arg1 : i32, i32
  }
  func.func @transform_3(%arg0: i32, %arg1: i32) -> (i32, i32) {
    %c0_i32 = arith.constant 0 : i32
    %c0_i32_0 = arith.constant 0 : i32
    return %arg1, %c0_i32 : i32, i32
  }
  func.func @transform_4(%arg0: i32, %arg1: i32) -> (i32, i32) {
    %c0_i32 = arith.constant 0 : i32
    %c0_i32_0 = arith.constant 0 : i32
    %c0_i32_1 = arith.constant 0 : i32
    return %c0_i32, %c0_i32_0 : i32, i32
  }
  func.func @transform_5(%arg0: i32, %arg1: i32) -> (i32, i32) {
    %c0_i32 = arith.constant 0 : i32
    %c0_i32_0 = arith.constant 0 : i32
    return %arg0, %c0_i32 : i32, i32
  }
}

</mosaic_0001>

<llo_original>
// kernel: _matmul_padded.1
$region0: #{_matmul_padded.1}
  #allocation0 [shape = 'u32[]', space=smem, size = 0x4, offset = 0x4, fixed_abs, tag = 'smem constant byte address 0x4 - core index']
  #allocation1 [shape = 'u32[144,128]{1,0:T(1,128)}', space=vmem, size = 0x12000, scoped, tag = 'internal scratch']
  %s0 = inlined_call_operand.hbm [shape: f32[1024,256], index: 0, kind: input, shape index: {}]
  %s1 = inlined_call_operand.hbm [shape: f32[1,256], index: 1, kind: input, shape index: {}]
  %s2 = inlined_call_operand.hbm [shape: f32[1,256], index: 2, kind: input, shape index: {}]
  %s3 = inlined_call_operand.hbm [shape: bf16[256,128], index: 3, kind: input, shape index: {}]
  %s4 = inlined_call_operand.hbm [shape: f32[1,128], index: 4, kind: input, shape index: {}]
  %s5 = inlined_call_operand.hbm [shape: f32[1024,128], index: 5, kind: output, shape index: {}]
  %s6 = sld [smem:[#allocation0]]
  $region85: #{_matmul_padded.1} parent=0
    _
  %s8 = ssub.s32 1, %s6
  %s9 = scalar_select 0, %s8, %s6
  $region1: #{_matmul_padded.1} parent=0
    #allocation2 [shape = 'u8[524288]{0}', space=vmem, size = 0x80000, scoped, tag = 'input window, operand 0']
    #allocation3 [shape = 's32[2]{0}', space=sflag, size = 0x8, scoped, tag = 'scoped memory for _matmul_padded.1']
    #allocation4 [shape = 's32[2]{0}', space=sflag, size = 0x8, scoped, tag = 'scoped memory for _matmul_padded.1']
    #allocation5 [shape = 'u8[1024]{0}', space=vmem, size = 0x400, scoped, tag = 'input window, operand 1, single buffered']
    #allocation6 [shape = 's32[1]{0}', space=sflag, size = 0x4, scoped, tag = 'scoped memory for _matmul_padded.1']
    #allocation7 [shape = 'u8[1024]{0}', space=vmem, size = 0x400, scoped, tag = 'input window, operand 2, single buffered']
    #allocation8 [shape = 'u8[65536]{0}', space=vmem, size = 0x10000, scoped, tag = 'input window, operand 3, single buffered']
    #allocation9 [shape = 's32[1]{0}', space=sflag, size = 0x4, scoped, tag = 'scoped memory for _matmul_padded.1']
    #allocation10 [shape = 'u8[512]{0}', space=vmem, size = 0x400, scoped, tag = 'input window, operand 4, single buffered']
    #allocation11 [shape = 'u8[262144]{0}', space=vmem, size = 0x40000, scoped, tag = 'output window, operand 0']
    %10 = vsyncpa [#allocation3], 0
    %s11 = scalar_lea.sflag [#allocation3], 1
    %12 = vsyncpa %s11, 0
    %13 = vsyncpa [#allocation6], 0
    %14 = vsyncpa [#allocation9], 0
    %15 = vsyncpa [#allocation4], 0
    %s16 = scalar_lea.sflag [#allocation4], 1
    %17 = vsyncpa %s16, 0
    loop: start=0, step=1, limit=6
    $region2: #{_matmul_padded.1} parent=1 // loop_pre_header
      _
    $region3: #{_matmul_padded.1} parent=1 // loop_header
      %s19 = sphi 0, %s23
      %p20 = scmp.ge.s32.totalorder %s19, 6
      %s26 = sphi 0, %s38
      %s27 = sphi 0, %s34
      %s28 = sphi 0, %s26
      %s29 = sphi 0, %s27
      %s30 = sphi 0, %s28
      %s31 = sphi 0, %s29
      %s43 = sphi 0, %s45
      %s46 = sphi 0, %s43
      %s47 = sphi 0, %s46
      %s63 = sphi 0, %s47
      %s69 = sphi 0, %s71
      %s72 = sphi 0, %s69
      %s73 = sphi 0, %s72
      %s89 = sphi 0, %s73
      %s95 = sphi 0, %s97
      %s98 = sphi 0, %s95
      %s99 = sphi 0, %s98
      %s115 = sphi 0, %s99
      %s121 = sphi 0, %s123
      %s124 = sphi 0, %s121
      %s125 = sphi 0, %s124
      %s141 = sphi 0, %s125
      %s145 = sphi 0, %s145
      %s147 = sphi 0, %s145
      %s148 = sphi 0, %s147
      %s162 = sphi 0, %s148
      %s168 = sphi 0, %s170
      %s171 = sphi 0, %s168
      %s172 = sphi 0, %s171
      %s188 = sphi 0, %s172
    $region4: #{_matmul_padded.1} parent=1 // loop_header_branch
      %22 = sbr.rel (%p20) target = $region8
    $region5: #{_matmul_padded.1} parent=1 // loop_body
      %s24 = ssub.s32 %s19, 1
      %s25 = ssub.s32 %s19, 2
      %s32 = sadd.s32 1, %s27
      %p33 = scmp.ge.s32.totalorder %s32, 1
      %s34 = scalar_select %p33, 0, %s32
      %s35 = sadd.s32 1, %s26
      %s36 = scalar_select %p33, %s35, %s26
      %p37 = scmp.ge.s32.totalorder %s36, 4
      %s38 = scalar_select %p37, 0, %s36
      %s39 = ssub.s32 %s26, %s38
      %s40 = ssub.s32 %s27, %s34
      %s41 = sor.u32 %s39, %s40
      %p42 = scmp.eq.s32.totalorder %s41, 0
      %s44 = sadd.s32 %s43, 1
      %s45 = scalar_select %p42, %s43, %s44
      %p48 = pneg %p42
      %p49 = scmp.eq.s32.totalorder %s19, 3
      %p50 = por %p48, %p49
      %p51 = scmp.ne.s32.totalorder %s43, %s46
      %p52 = scmp.eq.s32.totalorder %s19, 0
      %p53 = por %p51, %p52
      %p54 = scmp.ne.s32.totalorder %s43, %s46
      %p55 = scmp.eq.s32.totalorder %s24, 3
      %p56 = por %p54, %p55
      %p57 = scmp.ne.s32.totalorder %s46, %s47
      %p58 = scmp.eq.s32.totalorder %s24, 0
      %p59 = por %p57, %p58
      %p60 = scmp.ne.s32.totalorder %s46, %s47
      %p61 = scmp.eq.s32.totalorder %s25, 3
      %p62 = por %p60, %p61
      %p64 = scmp.ne.s32.totalorder %s47, %s63
      %p65 = scmp.eq.s32.totalorder %s25, 0
      %p66 = por %p64, %p65
      %s67 = ssub.s32 %s27, %s34
      %p68 = scmp.eq.s32.totalorder %s67, 0
      %s70 = sadd.s32 %s69, 1
      %s71 = scalar_select %p68, %s69, %s70
      %p74 = pneg %p68
      %p75 = scmp.eq.s32.totalorder %s19, 3
      %p76 = por %p74, %p75
      %p77 = scmp.ne.s32.totalorder %s69, %s72
      %p78 = scmp.eq.s32.totalorder %s19, 0
      %p79 = por %p77, %p78
      %p80 = scmp.ne.s32.totalorder %s69, %s72
      %p81 = scmp.eq.s32.totalorder %s24, 3
      %p82 = por %p80, %p81
      %p83 = scmp.ne.s32.totalorder %s72, %s73
      %p84 = scmp.eq.s32.totalorder %s24, 0
      %p85 = por %p83, %p84
      %p86 = scmp.ne.s32.totalorder %s72, %s73
      %p87 = scmp.eq.s32.totalorder %s25, 3
      %p88 = por %p86, %p87
      %p90 = scmp.ne.s32.totalorder %s73, %s89
      %p91 = scmp.eq.s32.totalorder %s25, 0
      %p92 = por %p90, %p91
      %s93 = ssub.s32 %s27, %s34
      %p94 = scmp.eq.s32.totalorder %s93, 0
      %s96 = sadd.s32 %s95, 1
      %s97 = scalar_select %p94, %s95, %s96
      %p100 = pneg %p94
      %p101 = scmp.eq.s32.totalorder %s19, 3
      %p102 = por %p100, %p101
      %p103 = scmp.ne.s32.totalorder %s95, %s98
      %p104 = scmp.eq.s32.totalorder %s19, 0
      %p105 = por %p103, %p104
      %p106 = scmp.ne.s32.totalorder %s95, %s98
      %p107 = scmp.eq.s32.totalorder %s24, 3
      %p108 = por %p106, %p107
      %p109 = scmp.ne.s32.totalorder %s98, %s99
      %p110 = scmp.eq.s32.totalorder %s24, 0
      %p111 = por %p109, %p110
      %p112 = scmp.ne.s32.totalorder %s98, %s99
      %p113 = scmp.eq.s32.totalorder %s25, 3
      %p114 = por %p112, %p113
      %p116 = scmp.ne.s32.totalorder %s99, %s115
      %p117 = scmp.eq.s32.totalorder %s25, 0
      %p118 = por %p116, %p117
      %s119 = ssub.s32 %s27, %s34
      %p120 = scmp.eq.s32.totalorder %s119, 0
      %s122 = sadd.s32 %s121, 1
      %s123 = scalar_select %p120, %s121, %s122
      %p126 = pneg %p120
      %p127 = scmp.eq.s32.totalorder %s19, 3
      %p128 = por %p126, %p127
      %p129 = scmp.ne.s32.totalorder %s121, %s124
      %p130 = scmp.eq.s32.totalorder %s19, 0
      %p131 = por %p129, %p130
      %p132 = scmp.ne.s32.totalorder %s121, %s124
      %p133 = scmp.eq.s32.totalorder %s24, 3
      %p134 = por %p132, %p133
      %p135 = scmp.ne.s32.totalorder %s124, %s125
      %p136 = scmp.eq.s32.totalorder %s24, 0
      %p137 = por %p135, %p136
      %p138 = scmp.ne.s32.totalorder %s124, %s125
      %p139 = scmp.eq.s32.totalorder %s25, 3
      %p140 = por %p138, %p139
      %p142 = scmp.ne.s32.totalorder %s125, %s141
      %p143 = scmp.eq.s32.totalorder %s25, 0
      %p144 = por %p142, %p143
      %s146 = sadd.s32 %s145, 1
      %p149 = scmp.eq.s32.totalorder %s19, 3
      %p150 = scmp.ne.s32.totalorder %s145, %s147
      %p151 = scmp.eq.s32.totalorder %s19, 0
      %p152 = por %p150, %p151
      %p153 = scmp.ne.s32.totalorder %s145, %s147
      %p154 = scmp.eq.s32.totalorder %s24, 3
      %p155 = por %p153, %p154
      %p156 = scmp.ne.s32.totalorder %s147, %s148
      %p157 = scmp.eq.s32.totalorder %s24, 0
      %p158 = por %p156, %p157
      %p159 = scmp.ne.s32.totalorder %s147, %s148
      %p160 = scmp.eq.s32.totalorder %s25, 3
      %p161 = por %p159, %p160
      %p163 = scmp.ne.s32.totalorder %s148, %s162
      %p164 = scmp.eq.s32.totalorder %s25, 0
      %p165 = por %p163, %p164
      %s166 = ssub.s32 %s26, %s38
      %p167 = scmp.eq.s32.totalorder %s166, 0
      %s169 = sadd.s32 %s168, 1
      %s170 = scalar_select %p167, %s168, %s169
      %p173 = pneg %p167
      %p174 = scmp.eq.s32.totalorder %s19, 3
      %p175 = por %p173, %p174
      %p176 = scmp.ne.s32.totalorder %s168, %s171
      %p177 = scmp.eq.s32.totalorder %s19, 0
      %p178 = por %p176, %p177
      %p179 = scmp.ne.s32.totalorder %s168, %s171
      %p180 = scmp.eq.s32.totalorder %s24, 3
      %p181 = por %p179, %p180
      %p182 = scmp.ne.s32.totalorder %s171, %s172
      %p183 = scmp.eq.s32.totalorder %s24, 0
      %p184 = por %p182, %p183
      %p185 = scmp.ne.s32.totalorder %s171, %s172
      %p186 = scmp.eq.s32.totalorder %s25, 3
      %p187 = por %p185, %p186
      %p189 = scmp.ne.s32.totalorder %s172, %s188
      %p190 = scmp.eq.s32.totalorder %s25, 0
      %p191 = por %p189, %p190
      %p192 = scmp.le.s32.totalorder 1, %s19
      %p193 = scmp.lt.s32.totalorder %s19, 5
      %p194 = pnand %p192, %p193
      %p195 = pneg %p194
      // Predicated region
      $region9: #{_matmul_padded.1} parent=5 // pred_check
        _
      $region10: #{_matmul_padded.1} parent=5 // pred_check_branch
        %197 = sbr.rel (%p194) target = $region12
      $region11: #{_matmul_padded.1} parent=5 // pred_region
        %s198 = ssub.s32 %s19, 1
        // Predicated region
        $region13: #{_matmul_padded.1} parent=11 // pred_check
          %p199 = pneg %p85
        $region14: #{_matmul_padded.1} parent=11 // pred_check_branch
          %201 = sbr.rel (%p199) target = $region16
        $region15: #{_matmul_padded.1} parent=11 // pred_region
          %s202 = smul.u32 2, %s29
          %s204 = ssub.s32 32, 32
          %205 = vsyncadd [#allocation6], %s204
          %s206 = smul.addr %s202, 16
          %s207 = scalar_lea.hbm %s1, %s206
          %s209 = sshll.u32 [#allocation5], 4
          %s210 = int_to_ptr.vmem [resolvable:$true] %s209
          %212 = dma.hbm_to_vmem [thread:$0]  %s207, 32, %s210, [#allocation6]
        $region16: #{_matmul_padded.1} parent=11 // pred_fallthru
          _
        // Predicated region
        $region17: #{_matmul_padded.1} parent=11 // pred_check
          %p213 = pneg %p111
        $region18: #{_matmul_padded.1} parent=11 // pred_check_branch
          %215 = sbr.rel (%p213) target = $region20
        $region19: #{_matmul_padded.1} parent=11 // pred_region
          %s216 = smul.u32 2, %s29
          %s218 = ssub.s32 32, 32
          %219 = vsyncadd [#allocation6], %s218
          %s220 = smul.addr %s216, 16
          %s221 = scalar_lea.hbm %s2, %s220
          %s223 = sshll.u32 [#allocation7], 4
          %s224 = int_to_ptr.vmem [resolvable:$true] %s223
          %226 = dma.hbm_to_vmem [thread:$0]  %s221, 32, %s224, [#allocation6]
        $region20: #{_matmul_padded.1} parent=11 // pred_fallthru
          _
        // Predicated region
        $region21: #{_matmul_padded.1} parent=11 // pred_check
          %p227 = pneg %p137
        $region22: #{_matmul_padded.1} parent=11 // pred_check_branch
          %229 = sbr.rel (%p227) target = $region24
        $region23: #{_matmul_padded.1} parent=11 // pred_region
          %s230 = smul.u32 32, %s29
          %s232 = ssub.s32 2048, 2048
          %233 = vsyncadd [#allocation9], %s232
          %s234 = smul.addr %s230, 64
          %s235 = scalar_lea.hbm %s3, %s234
          %s236 = sshll.u32 [#allocation8], 4
          %s237 = int_to_ptr.vmem [resolvable:$true] %s236
          %242 = dma.hbm_to_vmem [thread:$0]  %s235, 2048, %s237, [#allocation9], 64, 64, 4
        $region24: #{_matmul_padded.1} parent=11 // pred_fallthru
          _
        // Predicated region
        $region25: #{_matmul_padded.1} parent=11 // pred_check
          %p243 = pneg %p158
        $region26: #{_matmul_padded.1} parent=11 // pred_check_branch
          %245 = sbr.rel (%p243) target = $region28
        $region27: #{_matmul_padded.1} parent=11 // pred_region
          %s247 = ssub.s32 16, 16
          %248 = vsyncadd [#allocation9], %s247
          %s250 = sshll.u32 [#allocation10], 4
          %s251 = int_to_ptr.vmem [resolvable:$true] %s250
          %253 = dma.hbm_to_vmem [thread:$0]  %s4, 16, %s251, [#allocation9]
        $region28: #{_matmul_padded.1} parent=11 // pred_fallthru
          _
      $region12: #{_matmul_padded.1} parent=5 // pred_fallthru
        _
      %p254 = scmp.lt.s32.totalorder %s19, 4
      // Predicated region
      $region29: #{_matmul_padded.1} parent=5 // pred_check
        %p255 = pneg %p254
      $region30: #{_matmul_padded.1} parent=5 // pred_check_branch
        %257 = sbr.rel (%p255) target = $region32
      $region31: #{_matmul_padded.1} parent=5 // pred_region
        // Predicated region
        $region33: #{_matmul_padded.1} parent=31 // pred_check
          %p258 = pneg %p53
        $region34: #{_matmul_padded.1} parent=31 // pred_check_branch
          %260 = sbr.rel (%p258) target = $region36
        $region35: #{_matmul_padded.1} parent=31 // pred_region
          %s261 = sand.u32 %s43, 1
          %s262 = scalar_lea.sflag [#allocation3], %s261
          %s263 = sand.u32 %s43, 1
          %s264 = smul.addr %s263, 512
          %s265 = scalar_lea.vmem [#allocation2], %s264
          %s266 = smul.u32 32, %s26
          %s267 = smul.u32 2, %s27
          %s269 = ssub.s32 8192, 8192
          %270 = vsyncadd %s262, %s269
          %s271 = smul.addr %s266, 2
          %s272 = sadd.s32 %s267, %s271
          %s273 = smul.addr %s272, 128
          %s274 = scalar_lea.hbm %s0, %s273
          %s275 = sshll.u32 %s265, 4
          %s276 = int_to_ptr.vmem [resolvable:$true] %s275
          %281 = dma.hbm_to_vmem [thread:$0]  %s274, 8192, %s276, %s262, 256, 256, 16
        $region36: #{_matmul_padded.1} parent=31 // pred_fallthru
          _
      $region32: #{_matmul_padded.1} parent=5 // pred_fallthru
        _
      %p282 = scmp.le.s32.totalorder 1, %s19
      %p283 = scmp.lt.s32.totalorder %s19, 5
      %p284 = pnand %p282, %p283
      %p285 = pneg %p284
      // Predicated region
      $region37: #{_matmul_padded.1} parent=5 // pred_check
        _
      $region38: #{_matmul_padded.1} parent=5 // pred_check_branch
        %287 = sbr.rel (%p284) target = $region40
      $region39: #{_matmul_padded.1} parent=5 // pred_region
        %s288 = ssub.s32 %s19, 1
        %s289 = sand.u32 %s46, 1
        %s290 = scalar_lea.sflag [#allocation3], %s289
        %s291 = sand.u32 %s46, 1
        %s292 = smul.addr %s291, 512
        %s293 = scalar_lea.vmem [#allocation2], %s292
        // Predicated region
        $region41: #{_matmul_padded.1} parent=39 // pred_check
          %p294 = pneg %p59
        $region42: #{_matmul_padded.1} parent=39 // pred_check_branch
          %296 = sbr.rel (%p294) target = $region44
        $region43: #{_matmul_padded.1} parent=39 // pred_region
          %297 = dma.done %s290, 8192
        $region44: #{_matmul_padded.1} parent=39 // pred_fallthru
          _
        // Predicated region
        $region45: #{_matmul_padded.1} parent=39 // pred_check
          %p298 = pneg %p85
        $region46: #{_matmul_padded.1} parent=39 // pred_check_branch
          %300 = sbr.rel (%p298) target = $region48
        $region47: #{_matmul_padded.1} parent=39 // pred_region
          %301 = dma.done [#allocation6], 32
        $region48: #{_matmul_padded.1} parent=39 // pred_fallthru
          _
        // Predicated region
        $region49: #{_matmul_padded.1} parent=39 // pred_check
          %p302 = pneg %p111
        $region50: #{_matmul_padded.1} parent=39 // pred_check_branch
          %304 = sbr.rel (%p302) target = $region52
        $region51: #{_matmul_padded.1} parent=39 // pred_region
          %305 = dma.done [#allocation6], 32
        $region52: #{_matmul_padded.1} parent=39 // pred_fallthru
          _
        // Predicated region
        $region53: #{_matmul_padded.1} parent=39 // pred_check
          %p306 = pneg %p137
        $region54: #{_matmul_padded.1} parent=39 // pred_check_branch
          %308 = sbr.rel (%p306) target = $region56
        $region55: #{_matmul_padded.1} parent=39 // pred_region
          %309 = dma.done [#allocation9], 2048
        $region56: #{_matmul_padded.1} parent=39 // pred_fallthru
          _
        // Predicated region
        $region57: #{_matmul_padded.1} parent=39 // pred_check
          %p310 = pneg %p158
        $region58: #{_matmul_padded.1} parent=39 // pred_check_branch
          %312 = sbr.rel (%p310) target = $region60
        $region59: #{_matmul_padded.1} parent=39 // pred_region
          %313 = dma.done [#allocation9], 16
        $region60: #{_matmul_padded.1} parent=39 // pred_fallthru
          _
        %s314 = sand.u32 %s46, 1
        %s315 = scalar_lea.sflag [#allocation3], %s314
        %s316 = sand.u32 %s46, 1
        %s317 = smul.addr %s316, 512
        %s318 = scalar_lea.vmem [#allocation2], %s317
        %p319 = pneg %p59
        %p320 = pneg %p56
        %p321 = pneg %p85
        %p322 = pneg %p82
        %p323 = pneg %p111
        %p324 = pneg %p108
        %p325 = pneg %p137
        %p326 = pneg %p134
        %p327 = pneg %p158
        %p328 = pneg %p155
        %p329 = pneg %p184
        %p330 = pneg %p181
        %s331 = sand.u32 %s171, 1
        %s332 = scalar_lea.sflag [#allocation4], %s331
        %s333 = sand.u32 %s171, 1
        %s334 = smul.addr %s333, 256
        %s335 = scalar_lea.vmem [#allocation11], %s334
        %s336 = smul.u32 32, %s28
        %s337 = smul.u32 2, %s29
        %s338 = smul.u32 2, %s29
        %s339 = smul.u32 2, %s29
        %s340 = smul.u32 32, %s29
        %s341 = smul.u32 32, %s28
        %v343 = vld [vmem:[%s293] sm:$0xff]
        %v344 = vld [vmem:[%s293 + $0x8] sm:$0xff]
        %v345 = vld [vmem:[%s293 + $0x10] sm:$0xff]
        %v346 = vld [vmem:[%s293 + $0x18] sm:$0xff]
        %v347 = vld [vmem:[%s293 + $0x20] sm:$0xff]
        %v348 = vld [vmem:[%s293 + $0x28] sm:$0xff]
        %v349 = vld [vmem:[%s293 + $0x30] sm:$0xff]
        %v350 = vld [vmem:[%s293 + $0x38] sm:$0xff]
        %v351 = vld [vmem:[%s293 + $0x40] sm:$0xff]
        %v352 = vld [vmem:[%s293 + $0x48] sm:$0xff]
        %v353 = vld [vmem:[%s293 + $0x50] sm:$0xff]
        %v354 = vld [vmem:[%s293 + $0x58] sm:$0xff]
        %v355 = vld [vmem:[%s293 + $0x60] sm:$0xff]
        %v356 = vld [vmem:[%s293 + $0x68] sm:$0xff]
        %v357 = vld [vmem:[%s293 + $0x70] sm:$0xff]
        %v358 = vld [vmem:[%s293 + $0x78] sm:$0xff]
        %v359 = vld [vmem:[%s293 + $0x80] sm:$0xff]
        %v360 = vld [vmem:[%s293 + $0x88] sm:$0xff]
        %v361 = vld [vmem:[%s293 + $0x90] sm:$0xff]
        %v362 = vld [vmem:[%s293 + $0x98] sm:$0xff]
        %v363 = vld [vmem:[%s293 + $0xa0] sm:$0xff]
        %v364 = vld [vmem:[%s293 + $0xa8] sm:$0xff]
        %v365 = vld [vmem:[%s293 + $0xb0] sm:$0xff]
        %v366 = vld [vmem:[%s293 + $0xb8] sm:$0xff]
        %v367 = vld [vmem:[%s293 + $0xc0] sm:$0xff]
        %v368 = vld [vmem:[%s293 + $0xc8] sm:$0xff]
        %v369 = vld [vmem:[%s293 + $0xd0] sm:$0xff]
        %v370 = vld [vmem:[%s293 + $0xd8] sm:$0xff]
        %v371 = vld [vmem:[%s293 + $0xe0] sm:$0xff]
        %v372 = vld [vmem:[%s293 + $0xe8] sm:$0xff]
        %v373 = vld [vmem:[%s293 + $0xf0] sm:$0xff]
        %v374 = vld [vmem:[%s293 + $0xf8] sm:$0xff]
        %v375 = vld [vmem:[%s293 + $0x100] sm:$0xff]
        %v376 = vld [vmem:[%s293 + $0x108] sm:$0xff]
        %v377 = vld [vmem:[%s293 + $0x110] sm:$0xff]
        %v378 = vld [vmem:[%s293 + $0x118] sm:$0xff]
        %v379 = vld [vmem:[%s293 + $0x120] sm:$0xff]
        %v380 = vld [vmem:[%s293 + $0x128] sm:$0xff]
        %v381 = vld [vmem:[%s293 + $0x130] sm:$0xff]
        %v382 = vld [vmem:[%s293 + $0x138] sm:$0xff]
        %v383 = vld [vmem:[%s293 + $0x140] sm:$0xff]
        %v384 = vld [vmem:[%s293 + $0x148] sm:$0xff]
        %v385 = vld [vmem:[%s293 + $0x150] sm:$0xff]
        %v386 = vld [vmem:[%s293 + $0x158] sm:$0xff]
        %v387 = vld [vmem:[%s293 + $0x160] sm:$0xff]
        %v388 = vld [vmem:[%s293 + $0x168] sm:$0xff]
        %v389 = vld [vmem:[%s293 + $0x170] sm:$0xff]
        %v390 = vld [vmem:[%s293 + $0x178] sm:$0xff]
        %v391 = vld [vmem:[%s293 + $0x180] sm:$0xff]
        %v392 = vld [vmem:[%s293 + $0x188] sm:$0xff]
        %v393 = vld [vmem:[%s293 + $0x190] sm:$0xff]
        %v394 = vld [vmem:[%s293 + $0x198] sm:$0xff]
        %v395 = vld [vmem:[%s293 + $0x1a0] sm:$0xff]
        %v396 = vld [vmem:[%s293 + $0x1a8] sm:$0xff]
        %v397 = vld [vmem:[%s293 + $0x1b0] sm:$0xff]
        %v398 = vld [vmem:[%s293 + $0x1b8] sm:$0xff]
        %v399 = vld [vmem:[%s293 + $0x1c0] sm:$0xff]
        %v400 = vld [vmem:[%s293 + $0x1c8] sm:$0xff]
        %v401 = vld [vmem:[%s293 + $0x1d0] sm:$0xff]
        %v402 = vld [vmem:[%s293 + $0x1d8] sm:$0xff]
        %v403 = vld [vmem:[%s293 + $0x1e0] sm:$0xff]
        %v404 = vld [vmem:[%s293 + $0x1e8] sm:$0xff]
        %v405 = vld [vmem:[%s293 + $0x1f0] sm:$0xff]
        %v406 = vld [vmem:[%s293 + $0x1f8] sm:$0xff]
        %v407 = vld [vmem:[#allocation5] sm:$0x3]
        %v409 = vlaneseq
        %v410 = vshrl.u32 %v409, 7
        %v411 = vsub.s32 0, %v410
        %v412 = vrot.slane %v407, %v411
        %v413 = vlaneseq
        %v414 = vshrl.u32 %v413, 7
        %v415 = vsub.s32 1, %v414
        %v416 = vrot.slane %v407, %v415
        %v419 = vmul.f32 %v343, %v412
        %v420 = vmul.f32 %v344, %v416
        %v421 = vmul.f32 %v345, %v412
        %v422 = vmul.f32 %v346, %v416
        %v423 = vmul.f32 %v347, %v412
        %v424 = vmul.f32 %v348, %v416
        %v425 = vmul.f32 %v349, %v412
        %v426 = vmul.f32 %v350, %v416
        %v427 = vmul.f32 %v351, %v412
        %v428 = vmul.f32 %v352, %v416
        %v429 = vmul.f32 %v353, %v412
        %v430 = vmul.f32 %v354, %v416
        %v431 = vmul.f32 %v355, %v412
        %v432 = vmul.f32 %v356, %v416
        %v433 = vmul.f32 %v357, %v412
        %v434 = vmul.f32 %v358, %v416
        %v435 = vmul.f32 %v359, %v412
        %v436 = vmul.f32 %v360, %v416
        %v437 = vmul.f32 %v361, %v412
        %v438 = vmul.f32 %v362, %v416
        %v439 = vmul.f32 %v363, %v412
        %v440 = vmul.f32 %v364, %v416
        %v441 = vmul.f32 %v365, %v412
        %v442 = vmul.f32 %v366, %v416
        %v443 = vmul.f32 %v367, %v412
        %v444 = vmul.f32 %v368, %v416
        %v445 = vmul.f32 %v369, %v412
        %v446 = vmul.f32 %v370, %v416
        %v447 = vmul.f32 %v371, %v412
        %v448 = vmul.f32 %v372, %v416
        %v449 = vmul.f32 %v373, %v412
        %v450 = vmul.f32 %v374, %v416
        %v451 = vmul.f32 %v375, %v412
        %v452 = vmul.f32 %v376, %v416
        %v453 = vmul.f32 %v377, %v412
        %v454 = vmul.f32 %v378, %v416
        %v455 = vmul.f32 %v379, %v412
        %v456 = vmul.f32 %v380, %v416
        %v457 = vmul.f32 %v381, %v412
        %v458 = vmul.f32 %v382, %v416
        %v459 = vmul.f32 %v383, %v412
        %v460 = vmul.f32 %v384, %v416
        %v461 = vmul.f32 %v385, %v412
        %v462 = vmul.f32 %v386, %v416
        %v463 = vmul.f32 %v387, %v412
        %v464 = vmul.f32 %v388, %v416
        %v465 = vmul.f32 %v389, %v412
        %v466 = vmul.f32 %v390, %v416
        %v467 = vmul.f32 %v391, %v412
        %v468 = vmul.f32 %v392, %v416
        %v469 = vmul.f32 %v393, %v412
        %v470 = vmul.f32 %v394, %v416
        %v471 = vmul.f32 %v395, %v412
        %v472 = vmul.f32 %v396, %v416
        %v473 = vmul.f32 %v397, %v412
        %v474 = vmul.f32 %v398, %v416
        %v475 = vmul.f32 %v399, %v412
        %v476 = vmul.f32 %v400, %v416
        %v477 = vmul.f32 %v401, %v412
        %v478 = vmul.f32 %v402, %v416
        %v479 = vmul.f32 %v403, %v412
        %v480 = vmul.f32 %v404, %v416
        %v481 = vmul.f32 %v405, %v412
        %v482 = vmul.f32 %v406, %v416
        %v483 = vld [vmem:[#allocation7] sm:$0x3]
        %v485 = vlaneseq
        %v486 = vshrl.u32 %v485, 7
        %v487 = vsub.s32 0, %v486
        %v488 = vrot.slane %v483, %v487
        %v489 = vlaneseq
        %v490 = vshrl.u32 %v489, 7
        %v491 = vsub.s32 1, %v490
        %v492 = vrot.slane %v483, %v491
        %v495 = vadd.f32 %v419, %v488
        %v496 = vadd.f32 %v420, %v492
        %v497 = vadd.f32 %v421, %v488
        %v498 = vadd.f32 %v422, %v492
        %v499 = vadd.f32 %v423, %v488
        %v500 = vadd.f32 %v424, %v492
        %v501 = vadd.f32 %v425, %v488
        %v502 = vadd.f32 %v426, %v492
        %v503 = vadd.f32 %v427, %v488
        %v504 = vadd.f32 %v428, %v492
        %v505 = vadd.f32 %v429, %v488
        %v506 = vadd.f32 %v430, %v492
        %v507 = vadd.f32 %v431, %v488
        %v508 = vadd.f32 %v432, %v492
        %v509 = vadd.f32 %v433, %v488
        %v510 = vadd.f32 %v434, %v492
        %v511 = vadd.f32 %v435, %v488
        %v512 = vadd.f32 %v436, %v492
        %v513 = vadd.f32 %v437, %v488
        %v514 = vadd.f32 %v438, %v492
        %v515 = vadd.f32 %v439, %v488
        %v516 = vadd.f32 %v440, %v492
        %v517 = vadd.f32 %v441, %v488
        %v518 = vadd.f32 %v442, %v492
        %v519 = vadd.f32 %v443, %v488
        %v520 = vadd.f32 %v444, %v492
        %v521 = vadd.f32 %v445, %v488
        %v522 = vadd.f32 %v446, %v492
        %v523 = vadd.f32 %v447, %v488
        %v524 = vadd.f32 %v448, %v492
        %v525 = vadd.f32 %v449, %v488
        %v526 = vadd.f32 %v450, %v492
        %v527 = vadd.f32 %v451, %v488
        %v528 = vadd.f32 %v452, %v492
        %v529 = vadd.f32 %v453, %v488
        %v530 = vadd.f32 %v454, %v492
        %v531 = vadd.f32 %v455, %v488
        %v532 = vadd.f32 %v456, %v492
        %v533 = vadd.f32 %v457, %v488
        %v534 = vadd.f32 %v458, %v492
        %v535 = vadd.f32 %v459, %v488
        %v536 = vadd.f32 %v460, %v492
        %v537 = vadd.f32 %v461, %v488
        %v538 = vadd.f32 %v462, %v492
        %v539 = vadd.f32 %v463, %v488
        %v540 = vadd.f32 %v464, %v492
        %v541 = vadd.f32 %v465, %v488
        %v542 = vadd.f32 %v466, %v492
        %v543 = vadd.f32 %v467, %v488
        %v544 = vadd.f32 %v468, %v492
        %v545 = vadd.f32 %v469, %v488
        %v546 = vadd.f32 %v470, %v492
        %v547 = vadd.f32 %v471, %v488
        %v548 = vadd.f32 %v472, %v492
        %v549 = vadd.f32 %v473, %v488
        %v550 = vadd.f32 %v474, %v492
        %v551 = vadd.f32 %v475, %v488
        %v552 = vadd.f32 %v476, %v492
        %v553 = vadd.f32 %v477, %v488
        %v554 = vadd.f32 %v478, %v492
        %v555 = vadd.f32 %v479, %v488
        %v556 = vadd.f32 %v480, %v492
        %v557 = vadd.f32 %v481, %v488
        %v558 = vadd.f32 %v482, %v492
        %v559 = vpack.c.bf16 %v497, %v495
        %v560 = vpack.c.bf16 %v498, %v496
        %v561 = vpack.c.bf16 %v501, %v499
        %v562 = vpack.c.bf16 %v502, %v500
        %v563 = vpack.c.bf16 %v505, %v503
        %v564 = vpack.c.bf16 %v506, %v504
        %v565 = vpack.c.bf16 %v509, %v507
        %v566 = vpack.c.bf16 %v510, %v508
        %v567 = vpack.c.bf16 %v513, %v511
        %v568 = vpack.c.bf16 %v514, %v512
        %v569 = vpack.c.bf16 %v517, %v515
        %v570 = vpack.c.bf16 %v518, %v516
        %v571 = vpack.c.bf16 %v521, %v519
        %v572 = vpack.c.bf16 %v522, %v520
        %v573 = vpack.c.bf16 %v525, %v523
        %v574 = vpack.c.bf16 %v526, %v524
        %v575 = vpack.c.bf16 %v529, %v527
        %v576 = vpack.c.bf16 %v530, %v528
        %v577 = vpack.c.bf16 %v533, %v531
        %v578 = vpack.c.bf16 %v534, %v532
        %v579 = vpack.c.bf16 %v537, %v535
        %v580 = vpack.c.bf16 %v538, %v536
        %v581 = vpack.c.bf16 %v541, %v539
        %v582 = vpack.c.bf16 %v542, %v540
        %v583 = vpack.c.bf16 %v545, %v543
        %v584 = vpack.c.bf16 %v546, %v544
        %v585 = vpack.c.bf16 %v549, %v547
        %v586 = vpack.c.bf16 %v550, %v548
        %v587 = vpack.c.bf16 %v553, %v551
        %v588 = vpack.c.bf16 %v554, %v552
        %v589 = vpack.c.bf16 %v557, %v555
        %v590 = vpack.c.bf16 %v558, %v556
        %v591 = vld [vmem:[#allocation8] sm:$0xf]
        %v592 = vld [vmem:[#allocation8 + $0x4] sm:$0xf]
        %v593 = vld [vmem:[#allocation8 + $0x8] sm:$0xf]
        %v594 = vld [vmem:[#allocation8 + $0xc] sm:$0xf]
        %v595 = vld [vmem:[#allocation8 + $0x10] sm:$0xf]
        %v596 = vld [vmem:[#allocation8 + $0x14] sm:$0xf]
        %v597 = vld [vmem:[#allocation8 + $0x18] sm:$0xf]
        %v598 = vld [vmem:[#allocation8 + $0x1c] sm:$0xf]
        %v599 = vld [vmem:[#allocation8 + $0x20] sm:$0xf]
        %v600 = vld [vmem:[#allocation8 + $0x24] sm:$0xf]
        %v601 = vld [vmem:[#allocation8 + $0x28] sm:$0xf]
        %v602 = vld [vmem:[#allocation8 + $0x2c] sm:$0xf]
        %v603 = vld [vmem:[#allocation8 + $0x30] sm:$0xf]
        %v604 = vld [vmem:[#allocation8 + $0x34] sm:$0xf]
        %v605 = vld [vmem:[#allocation8 + $0x38] sm:$0xf]
        %v606 = vld [vmem:[#allocation8 + $0x3c] sm:$0xf]
        %v607 = vld [vmem:[#allocation8 + $0x40] sm:$0xf]
        %v608 = vld [vmem:[#allocation8 + $0x44] sm:$0xf]
        %v609 = vld [vmem:[#allocation8 + $0x48] sm:$0xf]
        %v610 = vld [vmem:[#allocation8 + $0x4c] sm:$0xf]
        %v611 = vld [vmem:[#allocation8 + $0x50] sm:$0xf]
        %v612 = vld [vmem:[#allocation8 + $0x54] sm:$0xf]
        %v613 = vld [vmem:[#allocation8 + $0x58] sm:$0xf]
        %v614 = vld [vmem:[#allocation8 + $0x5c] sm:$0xf]
        %v615 = vld [vmem:[#allocation8 + $0x60] sm:$0xf]
        %v616 = vld [vmem:[#allocation8 + $0x64] sm:$0xf]
        %v617 = vld [vmem:[#allocation8 + $0x68] sm:$0xf]
        %v618 = vld [vmem:[#allocation8 + $0x6c] sm:$0xf]
        %v619 = vld [vmem:[#allocation8 + $0x70] sm:$0xf]
        %v620 = vld [vmem:[#allocation8 + $0x74] sm:$0xf]
        %v621 = vld [vmem:[#allocation8 + $0x78] sm:$0xf]
        %v622 = vld [vmem:[#allocation8 + $0x7c] sm:$0xf]
        %v655 = vunpack.c.l.b16 %v591
        %v656 = vunpack.c.l.b16 %v592
        %v657 = vunpack.c.l.b16 %v593
        %v658 = vunpack.c.l.b16 %v594
        %v659 = vunpack.c.l.b16 %v595
        %v660 = vunpack.c.l.b16 %v596
        %v661 = vunpack.c.l.b16 %v597
        %v662 = vunpack.c.l.b16 %v598
        %v663 = vunpack.c.l.b16 %v599
        %v664 = vunpack.c.l.b16 %v600
        %v665 = vunpack.c.l.b16 %v601
        %v666 = vunpack.c.l.b16 %v602
        %v667 = vunpack.c.l.b16 %v603
        %v668 = vunpack.c.l.b16 %v604
        %v669 = vunpack.c.l.b16 %v605
        %v670 = vunpack.c.l.b16 %v606
        %v671 = vunpack.c.l.b16 %v607
        %v672 = vunpack.c.l.b16 %v608
        %v673 = vunpack.c.l.b16 %v609
        %v674 = vunpack.c.l.b16 %v610
        %v675 = vunpack.c.l.b16 %v611
        %v676 = vunpack.c.l.b16 %v612
        %v677 = vunpack.c.l.b16 %v613
        %v678 = vunpack.c.l.b16 %v614
        %v679 = vunpack.c.l.b16 %v615
        %v680 = vunpack.c.l.b16 %v616
        %v681 = vunpack.c.l.b16 %v617
        %v682 = vunpack.c.l.b16 %v618
        %v683 = vunpack.c.l.b16 %v619
        %v684 = vunpack.c.l.b16 %v620
        %v685 = vunpack.c.l.b16 %v621
        %v686 = vunpack.c.l.b16 %v622
        %v687 = vpack.c.b16 %v656, %v655
        %v688 = vpack.c.b16 %v658, %v657
        %v689 = vpack.c.b16 %v660, %v659
        %v690 = vpack.c.b16 %v662, %v661
        %v691 = vpack.c.b16 %v664, %v663
        %v692 = vpack.c.b16 %v666, %v665
        %v693 = vpack.c.b16 %v668, %v667
        %v694 = vpack.c.b16 %v670, %v669
        %v695 = vpack.c.b16 %v672, %v671
        %v696 = vpack.c.b16 %v674, %v673
        %v697 = vpack.c.b16 %v676, %v675
        %v698 = vpack.c.b16 %v678, %v677
        %v699 = vpack.c.b16 %v680, %v679
        %v700 = vpack.c.b16 %v682, %v681
        %v701 = vpack.c.b16 %v684, %v683
        %v702 = vpack.c.b16 %v686, %v685
        %719 = vmatprep.subr.bf16.mxu0 0
        %720 = vmatpush1.bf16.msra.mxu0 %v687
        %721 = vmatprep.subr.bf16.mxu0 0
        %722 = vmatpush1.bf16.msra.mxu0 %v688
        %723 = vmatprep.subr.bf16.mxu0 0
        %724 = vmatpush1.bf16.msra.mxu0 %v689
        %725 = vmatprep.subr.bf16.mxu0 0
        %726 = vmatpush1.bf16.msra.mxu0 %v690
        %727 = vmatprep.subr.bf16.mxu0 0
        %728 = vmatpush1.bf16.msra.mxu0 %v691
        %729 = vmatprep.subr.bf16.mxu0 0
        %730 = vmatpush1.bf16.msra.mxu0 %v692
        %731 = vmatprep.subr.bf16.mxu0 0
        %732 = vmatpush1.bf16.msra.mxu0 %v693
        %733 = vmatprep.subr.bf16.mxu0 0
        %734 = vmatpush1.bf16.msra.mxu0 %v694
        %735 = vmatprep.subr.bf16.mxu0 0
        %736 = vmatpush1.bf16.msra.mxu0 %v695
        %737 = vmatprep.subr.bf16.mxu0 0
        %738 = vmatpush1.bf16.msra.mxu0 %v696
        %739 = vmatprep.subr.bf16.mxu0 0
        %740 = vmatpush1.bf16.msra.mxu0 %v697
        %741 = vmatprep.subr.bf16.mxu0 0
        %742 = vmatpush1.bf16.msra.mxu0 %v698
        %743 = vmatprep.subr.bf16.mxu0 0
        %744 = vmatpush1.bf16.msra.mxu0 %v699
        %745 = vmatprep.subr.bf16.mxu0 0
        %746 = vmatpush1.bf16.msra.mxu0 %v700
        %747 = vmatprep.subr.bf16.mxu0 0
        %748 = vmatpush1.bf16.msra.mxu0 %v701
        %749 = vmatprep.subr.bf16.mxu0 0
        %750 = vmatpush1.bf16.msra.mxu0 %v702
        %751 = vmatprep.mubr.bf16.mxu0 %v560
        %752 = vmatmul.mubr.bf16.gmra.mrb[0].mxu0 %v559
        %v753 = vpop.f32.mrb[0].mxu0
        %v754 = vadd.f32 0.0, %v753
        %v755 = vpop.f32.mrb[0].mxu0
        %v756 = vpop.f32.mrb[0].mxu0
        %v757 = vadd.f32 0.0, %v756
        %v758 = vpop.f32.mrb[0].mxu0
        %759 = vmatprep.mubr.bf16.mxu0 %v562
        %760 = vmatmul.mubr.bf16.gmra.mrb[0].mxu0 %v561
        %v761 = vpop.f32.mrb[0].mxu0
        %v762 = vadd.f32 0.0, %v761
        %v763 = vpop.f32.mrb[0].mxu0
        %v764 = vpop.f32.mrb[0].mxu0
        %v765 = vadd.f32 0.0, %v764
        %v766 = vpop.f32.mrb[0].mxu0
        %767 = vmatprep.mubr.bf16.mxu0 %v564
        %768 = vmatmul.mubr.bf16.gmra.mrb[0].mxu0 %v563
        %v769 = vpop.f32.mrb[0].mxu0
        %v770 = vadd.f32 0.0, %v769
        %v771 = vpop.f32.mrb[0].mxu0
        %v772 = vpop.f32.mrb[0].mxu0
        %v773 = vadd.f32 0.0, %v772
        %v774 = vpop.f32.mrb[0].mxu0
        %775 = vmatprep.mubr.bf16.mxu0 %v566
        %776 = vmatmul.mubr.bf16.gmra.mrb[0].mxu0 %v565
        %v777 = vpop.f32.mrb[0].mxu0
        %v778 = vadd.f32 0.0, %v777
        %v779 = vpop.f32.mrb[0].mxu0
        %v780 = vpop.f32.mrb[0].mxu0
        %v781 = vadd.f32 0.0, %v780
        %v782 = vpop.f32.mrb[0].mxu0
        %783 = vmatprep.mubr.bf16.mxu0 %v568
        %784 = vmatmul.mubr.bf16.gmra.mrb[0].mxu0 %v567
        %v785 = vpop.f32.mrb[0].mxu0
        %v786 = vadd.f32 0.0, %v785
        %v787 = vpop.f32.mrb[0].mxu0
        %v788 = vpop.f32.mrb[0].mxu0
        %v789 = vadd.f32 0.0, %v788
        %v790 = vpop.f32.mrb[0].mxu0
        %791 = vmatprep.mubr.bf16.mxu0 %v570
        %792 = vmatmul.mubr.bf16.gmra.mrb[0].mxu0 %v569
        %v793 = vpop.f32.mrb[0].mxu0
        %v794 = vadd.f32 0.0, %v793
        %v795 = vpop.f32.mrb[0].mxu0
        %v796 = vpop.f32.mrb[0].mxu0
        %v797 = vadd.f32 0.0, %v796
        %v798 = vpop.f32.mrb[0].mxu0
        %799 = vmatprep.mubr.bf16.mxu0 %v572
        %800 = vmatmul.mubr.bf16.gmra.mrb[0].mxu0 %v571
        %v801 = vpop.f32.mrb[0].mxu0
        %v802 = vadd.f32 0.0, %v801
        %v803 = vpop.f32.mrb[0].mxu0
        %v804 = vpop.f32.mrb[0].mxu0
        %v805 = vadd.f32 0.0, %v804
        %v806 = vpop.f32.mrb[0].mxu0
        %807 = vmatprep.mubr.bf16.mxu0 %v574
        %808 = vmatmul.mubr.bf16.gmra.mrb[0].mxu0 %v573
        %v809 = vpop.f32.mrb[0].mxu0
        %v810 = vadd.f32 0.0, %v809
        %v811 = vpop.f32.mrb[0].mxu0
        %v812 = vpop.f32.mrb[0].mxu0
        %v813 = vadd.f32 0.0, %v812
        %v814 = vpop.f32.mrb[0].mxu0
        %815 = vmatprep.mubr.bf16.mxu0 %v576
        %816 = vmatmul.mubr.bf16.gmra.mrb[0].mxu0 %v575
        %v817 = vpop.f32.mrb[0].mxu0
        %v818 = vadd.f32 0.0, %v817
        %v819 = vpop.f32.mrb[0].mxu0
        %v820 = vpop.f32.mrb[0].mxu0
        %v821 = vadd.f32 0.0, %v820
        %v822 = vpop.f32.mrb[0].mxu0
        %823 = vmatprep.mubr.bf16.mxu0 %v578
        %824 = vmatmul.mubr.bf16.gmra.mrb[0].mxu0 %v577
        %v825 = vpop.f32.mrb[0].mxu0
        %v826 = vadd.f32 0.0, %v825
        %v827 = vpop.f32.mrb[0].mxu0
        %v828 = vpop.f32.mrb[0].mxu0
        %v829 = vadd.f32 0.0, %v828
        %v830 = vpop.f32.mrb[0].mxu0
        %831 = vmatprep.mubr.bf16.mxu0 %v580
        %832 = vmatmul.mubr.bf16.gmra.mrb[0].mxu0 %v579
        %v833 = vpop.f32.mrb[0].mxu0
        %v834 = vadd.f32 0.0, %v833
        %v835 = vpop.f32.mrb[0].mxu0
        %v836 = vpop.f32.mrb[0].mxu0
        %v837 = vadd.f32 0.0, %v836
        %v838 = vpop.f32.mrb[0].mxu0
        %839 = vmatprep.mubr.bf16.mxu0 %v582
        %840 = vmatmul.mubr.bf16.gmra.mrb[0].mxu0 %v581
        %v841 = vpop.f32.mrb[0].mxu0
        %v842 = vadd.f32 0.0, %v841
        %v843 = vpop.f32.mrb[0].mxu0
        %v844 = vpop.f32.mrb[0].mxu0
        %v845 = vadd.f32 0.0, %v844
        %v846 = vpop.f32.mrb[0].mxu0
        %847 = vmatprep.mubr.bf16.mxu0 %v584
        %848 = vmatmul.mubr.bf16.gmra.mrb[0].mxu0 %v583
        %v849 = vpop.f32.mrb[0].mxu0
        %v850 = vadd.f32 0.0, %v849
        %v851 = vpop.f32.mrb[0].mxu0
        %v852 = vpop.f32.mrb[0].mxu0
        %v853 = vadd.f32 0.0, %v852
        %v854 = vpop.f32.mrb[0].mxu0
        %855 = vmatprep.mubr.bf16.mxu0 %v586
        %856 = vmatmul.mubr.bf16.gmra.mrb[0].mxu0 %v585
        %v857 = vpop.f32.mrb[0].mxu0
        %v858 = vadd.f32 0.0, %v857
        %v859 = vpop.f32.mrb[0].mxu0
        %v860 = vpop.f32.mrb[0].mxu0
        %v861 = vadd.f32 0.0, %v860
        %v862 = vpop.f32.mrb[0].mxu0
        %863 = vmatprep.mubr.bf16.mxu0 %v588
        %864 = vmatmul.mubr.bf16.gmra.mrb[0].mxu0 %v587
        %v865 = vpop.f32.mrb[0].mxu0
        %v866 = vadd.f32 0.0, %v865
        %v867 = vpop.f32.mrb[0].mxu0
        %v868 = vpop.f32.mrb[0].mxu0
        %v869 = vadd.f32 0.0, %v868
        %v870 = vpop.f32.mrb[0].mxu0
        %871 = vmatprep.mubr.bf16.mxu0 %v590
        %872 = vmatmul.mubr.bf16.gmra.mrb[0].mxu0 %v589
        %v873 = vpop.f32.mrb[0].mxu0
        %v874 = vadd.f32 0.0, %v873
        %v875 = vpop.f32.mrb[0].mxu0
        %v876 = vpop.f32.mrb[0].mxu0
        %v877 = vadd.f32 0.0, %v876
        %v878 = vpop.f32.mrb[0].mxu0
        %879 = vdwg.mxu0
        %p880 = scmp.eq.s32.totalorder %s29, 0
        // Predicated region
        $region61: #{_matmul_padded.1} parent=39 // pred_check
          %p881 = pneg %p880
        $region62: #{_matmul_padded.1} parent=39 // pred_check_branch
          %883 = sbr.rel (%p881) target = $region64
        $region63: #{_matmul_padded.1} parent=39 // pred_region
          %884 = vst [vmem:[%s335] sm:$0xff] %v754
          %885 = vst [vmem:[%s335 + $0x8] sm:$0xff] %v757
          %886 = vst [vmem:[%s335 + $0x10] sm:$0xff] %v762
          %887 = vst [vmem:[%s335 + $0x18] sm:$0xff] %v765
          %888 = vst [vmem:[%s335 + $0x20] sm:$0xff] %v770
          %889 = vst [vmem:[%s335 + $0x28] sm:$0xff] %v773
          %890 = vst [vmem:[%s335 + $0x30] sm:$0xff] %v778
          %891 = vst [vmem:[%s335 + $0x38] sm:$0xff] %v781
          %892 = vst [vmem:[%s335 + $0x40] sm:$0xff] %v786
          %893 = vst [vmem:[%s335 + $0x48] sm:$0xff] %v789
          %894 = vst [vmem:[%s335 + $0x50] sm:$0xff] %v794
          %895 = vst [vmem:[%s335 + $0x58] sm:$0xff] %v797
          %896 = vst [vmem:[%s335 + $0x60] sm:$0xff] %v802
          %897 = vst [vmem:[%s335 + $0x68] sm:$0xff] %v805
          %898 = vst [vmem:[%s335 + $0x70] sm:$0xff] %v810
          %899 = vst [vmem:[%s335 + $0x78] sm:$0xff] %v813
          %900 = vst [vmem:[%s335 + $0x80] sm:$0xff] %v818
          %901 = vst [vmem:[%s335 + $0x88] sm:$0xff] %v821
          %902 = vst [vmem:[%s335 + $0x90] sm:$0xff] %v826
          %903 = vst [vmem:[%s335 + $0x98] sm:$0xff] %v829
          %904 = vst [vmem:[%s335 + $0xa0] sm:$0xff] %v834
          %905 = vst [vmem:[%s335 + $0xa8] sm:$0xff] %v837
          %906 = vst [vmem:[%s335 + $0xb0] sm:$0xff] %v842
          %907 = vst [vmem:[%s335 + $0xb8] sm:$0xff] %v845
          %908 = vst [vmem:[%s335 + $0xc0] sm:$0xff] %v850
          %909 = vst [vmem:[%s335 + $0xc8] sm:$0xff] %v853
          %910 = vst [vmem:[%s335 + $0xd0] sm:$0xff] %v858
          %911 = vst [vmem:[%s335 + $0xd8] sm:$0xff] %v861
          %912 = vst [vmem:[%s335 + $0xe0] sm:$0xff] %v866
          %913 = vst [vmem:[%s335 + $0xe8] sm:$0xff] %v869
          %914 = vst [vmem:[%s335 + $0xf0] sm:$0xff] %v874
          %915 = vst [vmem:[%s335 + $0xf8] sm:$0xff] %v877
        $region64: #{_matmul_padded.1} parent=39 // pred_fallthru
          _
        %p916 = scmp.gt.s32.totalorder %s29, 0
        // Predicated region
        $region65: #{_matmul_padded.1} parent=39 // pred_check
          %p917 = pneg %p916
        $region66: #{_matmul_padded.1} parent=39 // pred_check_branch
          %919 = sbr.rel (%p917) target = $region68
        $region67: #{_matmul_padded.1} parent=39 // pred_region
          %v920 = vld [vmem:[%s335] sm:$0xff]
          %v921 = vld [vmem:[%s335 + $0x8] sm:$0xff]
          %v922 = vld [vmem:[%s335 + $0x10] sm:$0xff]
          %v923 = vld [vmem:[%s335 + $0x18] sm:$0xff]
          %v924 = vld [vmem:[%s335 + $0x20] sm:$0xff]
          %v925 = vld [vmem:[%s335 + $0x28] sm:$0xff]
          %v926 = vld [vmem:[%s335 + $0x30] sm:$0xff]
          %v927 = vld [vmem:[%s335 + $0x38] sm:$0xff]
          %v928 = vld [vmem:[%s335 + $0x40] sm:$0xff]
          %v929 = vld [vmem:[%s335 + $0x48] sm:$0xff]
          %v930 = vld [vmem:[%s335 + $0x50] sm:$0xff]
          %v931 = vld [vmem:[%s335 + $0x58] sm:$0xff]
          %v932 = vld [vmem:[%s335 + $0x60] sm:$0xff]
          %v933 = vld [vmem:[%s335 + $0x68] sm:$0xff]
          %v934 = vld [vmem:[%s335 + $0x70] sm:$0xff]
          %v935 = vld [vmem:[%s335 + $0x78] sm:$0xff]
          %v936 = vld [vmem:[%s335 + $0x80] sm:$0xff]
          %v937 = vld [vmem:[%s335 + $0x88] sm:$0xff]
          %v938 = vld [vmem:[%s335 + $0x90] sm:$0xff]
          %v939 = vld [vmem:[%s335 + $0x98] sm:$0xff]
          %v940 = vld [vmem:[%s335 + $0xa0] sm:$0xff]
          %v941 = vld [vmem:[%s335 + $0xa8] sm:$0xff]
          %v942 = vld [vmem:[%s335 + $0xb0] sm:$0xff]
          %v943 = vld [vmem:[%s335 + $0xb8] sm:$0xff]
          %v944 = vld [vmem:[%s335 + $0xc0] sm:$0xff]
          %v945 = vld [vmem:[%s335 + $0xc8] sm:$0xff]
          %v946 = vld [vmem:[%s335 + $0xd0] sm:$0xff]
          %v947 = vld [vmem:[%s335 + $0xd8] sm:$0xff]
          %v948 = vld [vmem:[%s335 + $0xe0] sm:$0xff]
          %v949 = vld [vmem:[%s335 + $0xe8] sm:$0xff]
          %v950 = vld [vmem:[%s335 + $0xf0] sm:$0xff]
          %v951 = vld [vmem:[%s335 + $0xf8] sm:$0xff]
          %v952 = vadd.f32 %v920, %v754
          %v953 = vadd.f32 %v921, %v757
          %v954 = vadd.f32 %v922, %v762
          %v955 = vadd.f32 %v923, %v765
          %v956 = vadd.f32 %v924, %v770
          %v957 = vadd.f32 %v925, %v773
          %v958 = vadd.f32 %v926, %v778
          %v959 = vadd.f32 %v927, %v781
          %v960 = vadd.f32 %v928, %v786
          %v961 = vadd.f32 %v929, %v789
          %v962 = vadd.f32 %v930, %v794
          %v963 = vadd.f32 %v931, %v797
          %v964 = vadd.f32 %v932, %v802
          %v965 = vadd.f32 %v933, %v805
          %v966 = vadd.f32 %v934, %v810
          %v967 = vadd.f32 %v935, %v813
          %v968 = vadd.f32 %v936, %v818
          %v969 = vadd.f32 %v937, %v821
          %v970 = vadd.f32 %v938, %v826
          %v971 = vadd.f32 %v939, %v829
          %v972 = vadd.f32 %v940, %v834
          %v973 = vadd.f32 %v941, %v837
          %v974 = vadd.f32 %v942, %v842
          %v975 = vadd.f32 %v943, %v845
          %v976 = vadd.f32 %v944, %v850
          %v977 = vadd.f32 %v945, %v853
          %v978 = vadd.f32 %v946, %v858
          %v979 = vadd.f32 %v947, %v861
          %v980 = vadd.f32 %v948, %v866
          %v981 = vadd.f32 %v949, %v869
          %v982 = vadd.f32 %v950, %v874
          %v983 = vadd.f32 %v951, %v877
          %984 = vst [vmem:[%s335] sm:$0xff] %v952
          %985 = vst [vmem:[%s335 + $0x8] sm:$0xff] %v953
          %986 = vst [vmem:[%s335 + $0x10] sm:$0xff] %v954
          %987 = vst [vmem:[%s335 + $0x18] sm:$0xff] %v955
          %988 = vst [vmem:[%s335 + $0x20] sm:$0xff] %v956
          %989 = vst [vmem:[%s335 + $0x28] sm:$0xff] %v957
          %990 = vst [vmem:[%s335 + $0x30] sm:$0xff] %v958
          %991 = vst [vmem:[%s335 + $0x38] sm:$0xff] %v959
          %992 = vst [vmem:[%s335 + $0x40] sm:$0xff] %v960
          %993 = vst [vmem:[%s335 + $0x48] sm:$0xff] %v961
          %994 = vst [vmem:[%s335 + $0x50] sm:$0xff] %v962
          %995 = vst [vmem:[%s335 + $0x58] sm:$0xff] %v963
          %996 = vst [vmem:[%s335 + $0x60] sm:$0xff] %v964
          %997 = vst [vmem:[%s335 + $0x68] sm:$0xff] %v965
          %998 = vst [vmem:[%s335 + $0x70] sm:$0xff] %v966
          %999 = vst [vmem:[%s335 + $0x78] sm:$0xff] %v967
          %1000 = vst [vmem:[%s335 + $0x80] sm:$0xff] %v968
          %1001 = vst [vmem:[%s335 + $0x88] sm:$0xff] %v969
          %1002 = vst [vmem:[%s335 + $0x90] sm:$0xff] %v970
          %1003 = vst [vmem:[%s335 + $0x98] sm:$0xff] %v971
          %1004 = vst [vmem:[%s335 + $0xa0] sm:$0xff] %v972
          %1005 = vst [vmem:[%s335 + $0xa8] sm:$0xff] %v973
          %1006 = vst [vmem:[%s335 + $0xb0] sm:$0xff] %v974
          %1007 = vst [vmem:[%s335 + $0xb8] sm:$0xff] %v975
          %1008 = vst [vmem:[%s335 + $0xc0] sm:$0xff] %v976
          %1009 = vst [vmem:[%s335 + $0xc8] sm:$0xff] %v977
          %1010 = vst [vmem:[%s335 + $0xd0] sm:$0xff] %v978
          %1011 = vst [vmem:[%s335 + $0xd8] sm:$0xff] %v979
          %1012 = vst [vmem:[%s335 + $0xe0] sm:$0xff] %v980
          %1013 = vst [vmem:[%s335 + $0xe8] sm:$0xff] %v981
          %1014 = vst [vmem:[%s335 + $0xf0] sm:$0xff] %v982
          %1015 = vst [vmem:[%s335 + $0xf8] sm:$0xff] %v983
        $region68: #{_matmul_padded.1} parent=39 // pred_fallthru
          _
        // Predicated region
        $region69: #{_matmul_padded.1} parent=39 // pred_check
          %p1016 = pneg %p880
        $region70: #{_matmul_padded.1} parent=39 // pred_check_branch
          %1018 = sbr.rel (%p1016) target = $region72
        $region71: #{_matmul_padded.1} parent=39 // pred_region
          %v1019 = vld [vmem:[%s335] sm:$0xff]
          %v1020 = vld [vmem:[%s335 + $0x8] sm:$0xff]
          %v1021 = vld [vmem:[%s335 + $0x10] sm:$0xff]
          %v1022 = vld [vmem:[%s335 + $0x18] sm:$0xff]
          %v1023 = vld [vmem:[%s335 + $0x20] sm:$0xff]
          %v1024 = vld [vmem:[%s335 + $0x28] sm:$0xff]
          %v1025 = vld [vmem:[%s335 + $0x30] sm:$0xff]
          %v1026 = vld [vmem:[%s335 + $0x38] sm:$0xff]
          %v1027 = vld [vmem:[%s335 + $0x40] sm:$0xff]
          %v1028 = vld [vmem:[%s335 + $0x48] sm:$0xff]
          %v1029 = vld [vmem:[%s335 + $0x50] sm:$0xff]
          %v1030 = vld [vmem:[%s335 + $0x58] sm:$0xff]
          %v1031 = vld [vmem:[%s335 + $0x60] sm:$0xff]
          %v1032 = vld [vmem:[%s335 + $0x68] sm:$0xff]
          %v1033 = vld [vmem:[%s335 + $0x70] sm:$0xff]
          %v1034 = vld [vmem:[%s335 + $0x78] sm:$0xff]
          %v1035 = vld [vmem:[%s335 + $0x80] sm:$0xff]
          %v1036 = vld [vmem:[%s335 + $0x88] sm:$0xff]
          %v1037 = vld [vmem:[%s335 + $0x90] sm:$0xff]
          %v1038 = vld [vmem:[%s335 + $0x98] sm:$0xff]
          %v1039 = vld [vmem:[%s335 + $0xa0] sm:$0xff]
          %v1040 = vld [vmem:[%s335 + $0xa8] sm:$0xff]
          %v1041 = vld [vmem:[%s335 + $0xb0] sm:$0xff]
          %v1042 = vld [vmem:[%s335 + $0xb8] sm:$0xff]
          %v1043 = vld [vmem:[%s335 + $0xc0] sm:$0xff]
          %v1044 = vld [vmem:[%s335 + $0xc8] sm:$0xff]
          %v1045 = vld [vmem:[%s335 + $0xd0] sm:$0xff]
          %v1046 = vld [vmem:[%s335 + $0xd8] sm:$0xff]
          %v1047 = vld [vmem:[%s335 + $0xe0] sm:$0xff]
          %v1048 = vld [vmem:[%s335 + $0xe8] sm:$0xff]
          %v1049 = vld [vmem:[%s335 + $0xf0] sm:$0xff]
          %v1050 = vld [vmem:[%s335 + $0xf8] sm:$0xff]
          %v1051 = vld [vmem:[#allocation10] sm:$0x1]
          %v1053 = vlaneseq
          %v1054 = vshrl.u32 %v1053, 7
          %v1055 = vsub.s32 0, %v1054
          %v1056 = vrot.slane %v1051, %v1055
          %v1058 = vadd.f32 %v1019, %v1056
          %v1059 = vadd.f32 %v1020, %v1056
          %v1060 = vadd.f32 %v1021, %v1056
          %v1061 = vadd.f32 %v1022, %v1056
          %v1062 = vadd.f32 %v1023, %v1056
          %v1063 = vadd.f32 %v1024, %v1056
          %v1064 = vadd.f32 %v1025, %v1056
          %v1065 = vadd.f32 %v1026, %v1056
          %v1066 = vadd.f32 %v1027, %v1056
          %v1067 = vadd.f32 %v1028, %v1056
          %v1068 = vadd.f32 %v1029, %v1056
          %v1069 = vadd.f32 %v1030, %v1056
          %v1070 = vadd.f32 %v1031, %v1056
          %v1071 = vadd.f32 %v1032, %v1056
          %v1072 = vadd.f32 %v1033, %v1056
          %v1073 = vadd.f32 %v1034, %v1056
          %v1074 = vadd.f32 %v1035, %v1056
          %v1075 = vadd.f32 %v1036, %v1056
          %v1076 = vadd.f32 %v1037, %v1056
          %v1077 = vadd.f32 %v1038, %v1056
          %v1078 = vadd.f32 %v1039, %v1056
          %v1079 = vadd.f32 %v1040, %v1056
          %v1080 = vadd.f32 %v1041, %v1056
          %v1081 = vadd.f32 %v1042, %v1056
          %v1082 = vadd.f32 %v1043, %v1056
          %v1083 = vadd.f32 %v1044, %v1056
          %v1084 = vadd.f32 %v1045, %v1056
          %v1085 = vadd.f32 %v1046, %v1056
          %v1086 = vadd.f32 %v1047, %v1056
          %v1087 = vadd.f32 %v1048, %v1056
          %v1088 = vadd.f32 %v1049, %v1056
          %v1089 = vadd.f32 %v1050, %v1056
          %1090 = vst [vmem:[%s335] sm:$0xff] %v1058
          %1091 = vst [vmem:[%s335 + $0x8] sm:$0xff] %v1059
          %1092 = vst [vmem:[%s335 + $0x10] sm:$0xff] %v1060
          %1093 = vst [vmem:[%s335 + $0x18] sm:$0xff] %v1061
          %1094 = vst [vmem:[%s335 + $0x20] sm:$0xff] %v1062
          %1095 = vst [vmem:[%s335 + $0x28] sm:$0xff] %v1063
          %1096 = vst [vmem:[%s335 + $0x30] sm:$0xff] %v1064
          %1097 = vst [vmem:[%s335 + $0x38] sm:$0xff] %v1065
          %1098 = vst [vmem:[%s335 + $0x40] sm:$0xff] %v1066
          %1099 = vst [vmem:[%s335 + $0x48] sm:$0xff] %v1067
          %1100 = vst [vmem:[%s335 + $0x50] sm:$0xff] %v1068
          %1101 = vst [vmem:[%s335 + $0x58] sm:$0xff] %v1069
          %1102 = vst [vmem:[%s335 + $0x60] sm:$0xff] %v1070
          %1103 = vst [vmem:[%s335 + $0x68] sm:$0xff] %v1071
          %1104 = vst [vmem:[%s335 + $0x70] sm:$0xff] %v1072
          %1105 = vst [vmem:[%s335 + $0x78] sm:$0xff] %v1073
          %1106 = vst [vmem:[%s335 + $0x80] sm:$0xff] %v1074
          %1107 = vst [vmem:[%s335 + $0x88] sm:$0xff] %v1075
          %1108 = vst [vmem:[%s335 + $0x90] sm:$0xff] %v1076
          %1109 = vst [vmem:[%s335 + $0x98] sm:$0xff] %v1077
          %1110 = vst [vmem:[%s335 + $0xa0] sm:$0xff] %v1078
          %1111 = vst [vmem:[%s335 + $0xa8] sm:$0xff] %v1079
          %1112 = vst [vmem:[%s335 + $0xb0] sm:$0xff] %v1080
          %1113 = vst [vmem:[%s335 + $0xb8] sm:$0xff] %v1081
          %1114 = vst [vmem:[%s335 + $0xc0] sm:$0xff] %v1082
          %1115 = vst [vmem:[%s335 + $0xc8] sm:$0xff] %v1083
          %1116 = vst [vmem:[%s335 + $0xd0] sm:$0xff] %v1084
          %1117 = vst [vmem:[%s335 + $0xd8] sm:$0xff] %v1085
          %1118 = vst [vmem:[%s335 + $0xe0] sm:$0xff] %v1086
          %1119 = vst [vmem:[%s335 + $0xe8] sm:$0xff] %v1087
          %1120 = vst [vmem:[%s335 + $0xf0] sm:$0xff] %v1088
          %1121 = vst [vmem:[%s335 + $0xf8] sm:$0xff] %v1089
        $region72: #{_matmul_padded.1} parent=39 // pred_fallthru
          _
        %s1122 = sand.u32 %s171, 1
        %s1123 = scalar_lea.sflag [#allocation4], %s1122
        %s1124 = sand.u32 %s171, 1
        %s1125 = smul.addr %s1124, 256
        %s1126 = scalar_lea.vmem [#allocation11], %s1125
        // Predicated region
        $region73: #{_matmul_padded.1} parent=39 // pred_check
          %p1127 = pneg %p181
        $region74: #{_matmul_padded.1} parent=39 // pred_check_branch
          %1129 = sbr.rel (%p1127) target = $region76
        $region75: #{_matmul_padded.1} parent=39 // pred_region
          %s1130 = smul.u32 32, %s28
          %s1132 = ssub.s32 4096, 4096
          %1133 = vsyncadd %s1123, %s1132
          %s1134 = smul.addr %s1130, 128
          %s1135 = scalar_lea.hbm %s5, %s1134
          %s1136 = sshll.u32 %s1126, 4
          %s1137 = int_to_ptr.vmem [resolvable:$true] %s1136
          %1142 = dma.vmem_to_hbm [thread:$0]  %s1137, 4096, %s1135, %s1123, 128, 128, 8
        $region76: #{_matmul_padded.1} parent=39 // pred_fallthru
          _
      $region40: #{_matmul_padded.1} parent=5 // pred_fallthru
        _
      %p1143 = scmp.le.s32.totalorder 2, %s19
      // Predicated region
      $region77: #{_matmul_padded.1} parent=5 // pred_check
        %p1144 = pneg %p1143
      $region78: #{_matmul_padded.1} parent=5 // pred_check_branch
        %1146 = sbr.rel (%p1144) target = $region80
      $region79: #{_matmul_padded.1} parent=5 // pred_region
        %s1147 = ssub.s32 %s19, 2
        // Predicated region
        $region81: #{_matmul_padded.1} parent=79 // pred_check
          %p1148 = pneg %p187
        $region82: #{_matmul_padded.1} parent=79 // pred_check_branch
          %1150 = sbr.rel (%p1148) target = $region84
        $region83: #{_matmul_padded.1} parent=79 // pred_region
          %s1151 = sand.u32 %s172, 1
          %s1152 = scalar_lea.sflag [#allocation4], %s1151
          %s1153 = sand.u32 %s172, 1
          %s1154 = smul.addr %s1153, 256
          %s1155 = scalar_lea.vmem [#allocation11], %s1154
          %1156 = dma.done %s1152, 4096
        $region84: #{_matmul_padded.1} parent=79 // pred_fallthru
          _
      $region80: #{_matmul_padded.1} parent=5 // pred_fallthru
        _
    $region6: #{_matmul_padded.1} parent=1 // loop_footer
      %s23 = sadd.s32 1, %s19
    $region7: #{_matmul_padded.1} parent=1 // loop_footer_branch
      %18 = sbr.rel target = $region3
    $region8: #{_matmul_padded.1} parent=1 // loop_exit
      _
    %1157 = vsyncpa [#allocation3], 1
    %s1158 = scalar_lea.sflag [#allocation3], 1
    %1159 = vsyncpa %s1158, 1
    %1160 = vsyncpa [#allocation6], 1
    %1161 = vsyncpa [#allocation9], 1
    %1162 = vsyncpa [#allocation4], 1
    %s1163 = scalar_lea.sflag [#allocation4], 1
    %1164 = vsyncpa %s1163, 1

</llo_original>
